<compile_context>
chip_gen: v6e
topology: v6e:2x2x1
jax: 0.10.0
libtpu: 0.0.40
codegen_flags: <defaults>
</compile_context>

<pallas_src>
import functools

import jax
import jax.numpy as jnp
from jax.experimental import pallas as pl
from jax.experimental.pallas import tpu as pltpu


_VMEM_LIMIT = 48 * 1024 * 1024   # explicit budget: safe on v5e/v6e (128 MiB) and v7x (64 MiB)


# ---------------------------------------------------------------------------
# Pallas kernels
# ---------------------------------------------------------------------------
def _matmul_bias_kernel(w_ref, x_ref, b_ref, o_ref):
    # (C_out, K) @ (K, tn) on the MXU, f32 accumulation, bias epilogue on the VPU.
    acc = jnp.dot(w_ref[...], x_ref[...], preferred_element_type=jnp.float32)
    o_ref[...] = (acc + b_ref[...]).astype(o_ref.dtype)


def _pick_lane_tile(M):
    # Lane-dense tiles (multiples of 128); prefer >=4 grid steps so the software
    # pipeline has depth and v7x's 2 TensorCores both get work.
    for t in (1024, 512, 256, 128):
        if M >= 4 * t:
            return t
    return 128


def matmul_lane_dense(w2, cols_t, bias, out_dtype=jnp.float32):
    """out(C_out, M) = w2(C_out, K) @ cols_t(K, M) + bias(C_out, 1)."""
    C_out, K = w2.shape
    K2, M = cols_t.shape
    assert K == K2
    tn = _pick_lane_tile(M)
    return pl.pallas_call(
        _matmul_bias_kernel,
        out_shape=jax.ShapeDtypeStruct((C_out, M), out_dtype),
        grid=(pl.cdiv(M, tn),),
        in_specs=[pl.BlockSpec((C_out, K), lambda i: (0, 0)),    # resident weights
                  pl.BlockSpec((K, tn), lambda i: (0, i)),       # streamed cols (full K)
                  pl.BlockSpec((C_out, 1), lambda i: (0, 0))],   # resident bias
        out_specs=pl.BlockSpec((C_out, tn), lambda i: (0, i)),
        compiler_params=pltpu.CompilerParams(
            dimension_semantics=("parallel",),
            vmem_limit_bytes=_VMEM_LIMIT),
    )(w2, cols_t, bias)


def _inorm_act_kernel(x_ref, o_ref, *, act):
    # One row per (c, n) instance; normalize over the flattened spatial axis.
    x = x_ref[...].astype(jnp.float32)
    mean = jnp.mean(x, axis=-1, keepdims=True)
    xc = x - mean
    var = jnp.mean(xc * xc, axis=-1, keepdims=True)      # biased variance (PyTorch IN)
    y = xc * jax.lax.rsqrt(var + 1e-5)
    if act == "relu":
        y = jnp.maximum(y, 0.0)
    else:  # leaky relu, slope 0.2
        y = jnp.where(y >= 0.0, y, 0.2 * y)
    o_ref[...] = y.astype(o_ref.dtype)


def _pick_row_tile(R, S):
    # Keep one (tr, S) f32 block small enough to double-buffer, and leave at
    # least 2 grid steps when possible (v7x has 2 TensorCores).
    tr = max(8, min(256, ((4 * 1024 * 1024) // max(4 * S, 1)) // 8 * 8))
    if R >= 16:
        tr = min(tr, max(8, (R // 2) // 8 * 8))
    return tr


def instance_norm_act(x_cnf, act):
    """InstanceNorm3d (affine=False, eps=1e-5) + activation on (C, N, D, H, W)."""
    C, N, D, H, W = x_cnf.shape
    R, S = C * N, D * H * W
    x2 = x_cnf.reshape(R, S)          # free reshape: each row is one (c, n) instance
    tr = _pick_row_tile(R, S)
    out = pl.pallas_call(
        functools.partial(_inorm_act_kernel, act=act),
        out_shape=jax.ShapeDtypeStruct((R, S), x2.dtype),
        grid=(pl.cdiv(R, tr),),
        in_specs=[pl.BlockSpec((tr, S), lambda i: (i, 0))],
        out_specs=pl.BlockSpec((tr, S), lambda i: (i, 0)),
        compiler_params=pltpu.CompilerParams(
            dimension_semantics=("parallel",),
            vmem_limit_bytes=_VMEM_LIMIT),
    )(x2)
    return out.reshape(C, N, D, H, W)


# ---------------------------------------------------------------------------
# Conv glue (im2col in XLA, bf16 operands, matmul in Pallas)
# ---------------------------------------------------------------------------
def _im2col_cnf(x, k, stride, padding):
    """x: (C, N, D, H, W) -> cols^T: (C*k^3, N*Do*Ho*Wo) bf16, K order (ci, dz, dy, dx)."""
    x = x.astype(jnp.bfloat16)
    C, N, D, H, W = x.shape
    if k == 1 and stride == 1 and padding == 0:
        return x.reshape(C, N * D * H * W), (N, D, H, W)
    # TODO(synk): fuse this patch gather into the matmul pallas_call (manual per-tap
    # DMA into a VMEM staging buffer) so the k^3-expanded cols matrix never hits HBM.
    if padding:
        x = jnp.pad(x, ((0, 0), (0, 0), (padding,) * 2, (padding,) * 2, (padding,) * 2))
    Dp, Hp, Wp = D + 2 * padding, H + 2 * padding, W + 2 * padding
    Do = (Dp - k) // stride + 1
    Ho = (Hp - k) // stride + 1
    Wo = (Wp - k) // stride + 1
    patches = []
    for dz in range(k):
        for dy in range(k):
            for dx in range(k):
                patches.append(
                    x[:, :,
                      dz:dz + stride * Do:stride,
                      dy:dy + stride * Ho:stride,
                      dx:dx + stride * Wo:stride])
    p = jnp.stack(patches, axis=1)                # (C, k^3, N, Do, Ho, Wo)
    return p.reshape(C * k * k * k, N * Do * Ho * Wo), (N, Do, Ho, Wo)


def conv3d_cnf(x, w, stride, padding, bias=None, out_dtype=jnp.float32):
    """Conv3d on channel-major activations; w: (C_out, C_in, k, k, k) (PyTorch layout)."""
    C_out, k = w.shape[0], w.shape[2]
    cols_t, (N, Do, Ho, Wo) = _im2col_cnf(x, k, stride, padding)
    w2 = w.reshape(C_out, -1).astype(jnp.bfloat16)
    b = jnp.zeros((C_out,), jnp.float32) if bias is None else bias.astype(jnp.float32)
    out = matmul_lane_dense(w2, cols_t, b.reshape(C_out, 1), out_dtype)  # (C_out, M)
    return out.reshape(C_out, N, Do, Ho, Wo)


# Per-axis selection of the 4-tap ConvTranspose kernel into 2-tap sub-filters
# embedded in 3 taps of the once-padded input xp = pad(x, 1):
#   parity 0:  y[2z]   = xp[z]*w[3]   + xp[z+1]*w[1]   (= x[z-1]*w[3] + x[z]*w[1])
#   parity 1:  y[2z+1] = xp[z+1]*w[2] + xp[z+2]*w[0]   (= x[z]*w[2]   + x[z+1]*w[0])
_SEL = [[[0, 0, 0, 1], [0, 1, 0, 0], [0, 0, 0, 0]],
        [[0, 0, 0, 0], [0, 0, 1, 0], [1, 0, 0, 0]]]


def conv_transpose3d_cnf(x, w_t):
    """ConvTranspose3d(k=4, s=2, p=1, bias=False) via stride-split / pixel-shuffle.

    w_t: (C_in, C_out, 4, 4, 4) (PyTorch ConvTranspose3d layout).  Lowered to one
    stride-1 k=3 conv producing all 8 output parities (8*C_out rows) followed by
    a depth-to-space interleave -- no zero-dilated input.
    """
    C_in, C_out = w_t.shape[0], w_t.shape[1]
    sel = jnp.asarray(_SEL, w_t.dtype)                       # (2 parities, 3 taps, 4 k)
    w_comb = jnp.einsum("zak,ybl,xcm,ioklm->zyxoiabc", sel, sel, sel, w_t)
    w_comb = w_comb.reshape(8 * C_out, C_in, 3, 3, 3)
    y = conv3d_cnf(x, w_comb, stride=1, padding=1)           # (8*C_out, N, D, H, W)
    _, N, D, H, W = y.shape
    y = y.reshape(2, 2, 2, C_out, N, D, H, W)
    y = jnp.transpose(y, (3, 4, 5, 0, 6, 1, 7, 2))           # (C_out, N, D, pz, H, py, W, px)
    return y.reshape(C_out, N, 2 * D, 2 * H, 2 * W)


# ---------------------------------------------------------------------------
# UNetBlockOuter forward
# ---------------------------------------------------------------------------
def unet_block_outer_forward(x, params):
    # internal layout: channel-major (C, N, D, H, W)
    h = jnp.transpose(x, (1, 0, 2, 3, 4))

    # encoder: Conv(4,s2,p1) -> IN -> ReLU -> Conv(3,s1,p1) -> IN -> ReLU
    h = conv3d_cnf(h, params["enc_w1"], stride=2, padding=1)
    h = instance_norm_act(h, "relu")
    h = conv3d_cnf(h, params["enc_w2"], stride=1, padding=1)
    encoded = instance_norm_act(h, "relu")

    # submodule: identity passthrough (BlockContent(encoded, None))
    # TODO(synk): real submodule is an arbitrary nested (sparse) UNet block supplied
    # externally; sparse proxy heads / pruning control flow are not representable here.
    processed = encoded

    # decoder: ConvT(4,s2,p1) -> ConvT(4,s2,p1) -> IN -> LeakyReLU(0.2) -> Conv1x1(+bias)
    d = conv_transpose3d_cnf(processed, params["dec_wt1"])
    d = conv_transpose3d_cnf(d, params["dec_wt2"])
    d = instance_norm_act(d, "leaky")
    out = conv3d_cnf(d, params["dec_w3"], stride=1, padding=0, bias=params["dec_b3"])

    return jnp.transpose(out, (1, 0, 2, 3, 4))               # back to NCDHW


# ---------------------------------------------------------------------------
if __name__ == "__main__":
    N_IN, C_IN, D = 2, 4, 8          # small input: (2, 4, 8, 8, 8)
    INNER, OUTER, C_OUT = 8, 8, 4    # inner == outer so identity submodule is channel-consistent

    key = jax.random.PRNGKey(0)
    ks = jax.random.split(key, 7)
    s = 0.1
    params = {
        "enc_w1": s * jax.random.normal(ks[0], (INNER, C_IN, 4, 4, 4), jnp.float32),
        "enc_w2": s * jax.random.normal(ks[1], (INNER, INNER, 3, 3, 3), jnp.float32),
        "dec_wt1": s * jax.random.normal(ks[2], (OUTER, OUTER, 4, 4, 4), jnp.float32),
        "dec_wt2": s * jax.random.normal(ks[3], (OUTER, OUTER, 4, 4, 4), jnp.float32),
        "dec_w3": s * jax.random.normal(ks[4], (C_OUT, OUTER, 1, 1, 1), jnp.float32),
        "dec_b3": s * jax.random.normal(ks[5], (C_OUT,), jnp.float32),
    }
    x = jax.random.normal(ks[6], (N_IN, C_IN, D, D, D), jnp.float32)

    fwd = jax.jit(unet_block_outer_forward)
    out = jax.block_until_ready(fwd(x, params))

    # encoder halves once, decoder upsamples twice -> 2x spatial, C_OUT channels
    assert out.shape == (N_IN, C_OUT, 2 * D, 2 * D, 2 * D), out.shape
    assert bool(jnp.all(jnp.isfinite(out)))
    print("KERNEL_OK")
</pallas_src>

<mosaic_0001>
module attributes {stable_mosaic.version = 11 : i64} {
  func.func @_matmul_bias_kernel(%arg0: i32, %arg1: memref<8x256xbf16, #tpu.memory_space<vmem>>, %arg2: memref<256x128xbf16, #tpu.memory_space<vmem>>, %arg3: memref<8x1xf32, #tpu.memory_space<vmem>>, %arg4: memref<8x128xf32, #tpu.memory_space<vmem>>) attributes {dimension_semantics = [#tpu.dimension_semantics<parallel>], iteration_bounds = array<i64: 1>, scalar_prefetch = 0 : i64, scratch_operands = 0 : i64, tpu.core_type = #tpu.core_type<tc>, window_params = [{pipeline_mode = #tpu.pipeline_mode<synchronous>, transform_indices = @transform_0, window_bounds = array<i64: 8, 256>}, {transform_indices = @transform_1, window_bounds = array<i64: 256, 128>}, {pipeline_mode = #tpu.pipeline_mode<synchronous>, transform_indices = @transform_2, window_bounds = array<i64: 8, 1>}, {transform_indices = @transform_3, window_bounds = array<i64: 8, 128>}]} {
    %c0 = arith.constant 0 : index
    %c0_0 = arith.constant 0 : index
    %0 = vector.load %arg1[%c0, %c0_0] : memref<8x256xbf16, #tpu.memory_space<vmem>>, vector<8x256xbf16>
    %c0_1 = arith.constant 0 : index
    %c0_2 = arith.constant 0 : index
    %1 = vector.load %arg2[%c0_1, %c0_2] : memref<256x128xbf16, #tpu.memory_space<vmem>>, vector<256x128xbf16>
    %cst = arith.constant dense<0.000000e+00> : vector<8x128xf32>
    %2 = tpu.matmul %0, %1, %cst {dimension_numbers = #tpu.dot_dimension_numbers<[1], [0], [0], [1], [0, 0, 1, 1], [], []>} : vector<8x256xbf16>, vector<256x128xbf16>, vector<8x128xf32> -> vector<8x128xf32>
    %c0_3 = arith.constant 0 : index
    %c0_4 = arith.constant 0 : index
    %3 = vector.load %arg3[%c0_3, %c0_4] : memref<8x1xf32, #tpu.memory_space<vmem>>, vector<8x1xf32>
    %4 = vector.broadcast %3 : vector<8x1xf32> to vector<8x128xf32>
    %5 = arith.addf %2, %4 : vector<8x128xf32>
    %c0_5 = arith.constant 0 : index
    %c0_6 = arith.constant 0 : index
    %6 = vector.load %arg4[%c0_5, %c0_6] : memref<8x128xf32, #tpu.memory_space<vmem>>, vector<8x128xf32>
    tpu.vector_store %arg4[%c0_5, %c0_6], %5 {strides = array<i32>} : memref<8x128xf32, #tpu.memory_space<vmem>>, vector<8x128xf32>,
    return
  }
  func.func @transform_0(%arg0: i32) -> (i32, i32) {
    %c0_i32 = arith.constant 0 : i32
    %c0_i32_0 = arith.constant 0 : i32
    %c0_i32_1 = arith.constant 0 : i32
    return %c0_i32, %c0_i32_0 : i32, i32
  }
  func.func @transform_1(%arg0: i32) -> (i32, i32) {
    %c0_i32 = arith.constant 0 : i32
    %c0_i32_0 = arith.constant 0 : i32
    return %c0_i32, %arg0 : i32, i32
  }
  func.func @transform_2(%arg0: i32) -> (i32, i32) {
    %c0_i32 = arith.constant 0 : i32
    %c0_i32_0 = arith.constant 0 : i32
    %c0_i32_1 = arith.constant 0 : i32
    return %c0_i32, %c0_i32_0 : i32, i32
  }
  func.func @transform_3(%arg0: i32) -> (i32, i32) {
    %c0_i32 = arith.constant 0 : i32
    %c0_i32_0 = arith.constant 0 : i32
    return %c0_i32, %arg0 : i32, i32
  }
}

module attributes {stable_mosaic.version = 11 : i64} {
  func.func @_inorm_act_kernel(%arg0: i32, %arg1: memref<8x64xf32, #tpu.memory_space<vmem>>, %arg2: memref<8x64xf32, #tpu.memory_space<vmem>>) attributes {dimension_semantics = [#tpu.dimension_semantics<parallel>], iteration_bounds = array<i64: 2>, scalar_prefetch = 0 : i64, scratch_operands = 0 : i64, tpu.core_type = #tpu.core_type<tc>, window_params = [{transform_indices = @transform_0, window_bounds = array<i64: 8, 64>}, {transform_indices = @transform_1, window_bounds = array<i64: 8, 64>}]} {
    %c0 = arith.constant 0 : index
    %c0_0 = arith.constant 0 : index
    %0 = vector.load %arg1[%c0, %c0_0] : memref<8x64xf32, #tpu.memory_space<vmem>>, vector<8x64xf32>
    %cst = arith.constant dense<0.000000e+00> : vector<8xf32>
    %1 = vector.multi_reduction <add>, %0, %cst [1] : vector<8x64xf32> to vector<8xf32>
    %2 = vector.shape_cast %1 : vector<8xf32> to vector<8x1xf32>
    %cst_1 = arith.constant 6.400000e+01 : f32
    %3 = vector.broadcast %cst_1 : f32 to vector<8x1xf32>
    %4 = arith.divf %2, %3 : vector<8x1xf32>
    %5 = vector.broadcast %4 : vector<8x1xf32> to vector<8x64xf32>
    %6 = arith.subf %0, %5 : vector<8x64xf32>
    %7 = arith.mulf %6, %6 : vector<8x64xf32>
    %cst_2 = arith.constant dense<0.000000e+00> : vector<8xf32>
    %8 = vector.multi_reduction <add>, %7, %cst_2 [1] : vector<8x64xf32> to vector<8xf32>
    %9 = vector.shape_cast %8 : vector<8xf32> to vector<8x1xf32>
    %cst_3 = arith.constant 6.400000e+01 : f32
    %10 = vector.broadcast %cst_3 : f32 to vector<8x1xf32>
    %11 = arith.divf %9, %10 : vector<8x1xf32>
    %cst_4 = arith.constant 9.99999974E-6 : f32
    %12 = vector.broadcast %cst_4 : f32 to vector<8x1xf32>
    %13 = arith.addf %11, %12 : vector<8x1xf32>
    %14 = math.rsqrt %13 : vector<8x1xf32>
    %15 = vector.broadcast %14 : vector<8x1xf32> to vector<8x64xf32>
    %16 = arith.mulf %6, %15 : vector<8x64xf32>
    %cst_5 = arith.constant 0.000000e+00 : f32
    %17 = vector.broadcast %cst_5 : f32 to vector<8x64xf32>
    %18 = arith.maximumf %16, %17 : vector<8x64xf32>
    %c0_6 = arith.constant 0 : index
    %c0_7 = arith.constant 0 : index
    %19 = vector.load %arg2[%c0_6, %c0_7] : memref<8x64xf32, #tpu.memory_space<vmem>>, vector<8x64xf32>
    tpu.vector_store %arg2[%c0_6, %c0_7], %18 {strides = array<i32>} : memref<8x64xf32, #tpu.memory_space<vmem>>, vector<8x64xf32>,
    return
  }
  func.func @transform_0(%arg0: i32) -> (i32, i32) {
    %c0_i32 = arith.constant 0 : i32
    %c0_i32_0 = arith.constant 0 : i32
    return %arg0, %c0_i32 : i32, i32
  }
  func.func @transform_1(%arg0: i32) -> (i32, i32) {
    %c0_i32 = arith.constant 0 : i32
    %c0_i32_0 = arith.constant 0 : i32
    return %arg0, %c0_i32 : i32, i32
  }
}

module attributes {stable_mosaic.version = 11 : i64} {
  func.func @_matmul_bias_kernel(%arg0: i32, %arg1: memref<8x216xbf16, #tpu.memory_space<vmem>>, %arg2: memref<216x128xbf16, #tpu.memory_space<vmem>>, %arg3: memref<8x1xf32, #tpu.memory_space<vmem>>, %arg4: memref<8x128xf32, #tpu.memory_space<vmem>>) attributes {dimension_semantics = [#tpu.dimension_semantics<parallel>], iteration_bounds = array<i64: 1>, scalar_prefetch = 0 : i64, scratch_operands = 0 : i64, tpu.core_type = #tpu.core_type<tc>, window_params = [{pipeline_mode = #tpu.pipeline_mode<synchronous>, transform_indices = @transform_0, window_bounds = array<i64: 8, 216>}, {transform_indices = @transform_1, window_bounds = array<i64: 216, 128>}, {pipeline_mode = #tpu.pipeline_mode<synchronous>, transform_indices = @transform_2, window_bounds = array<i64: 8, 1>}, {transform_indices = @transform_3, window_bounds = array<i64: 8, 128>}]} {
    %c0 = arith.constant 0 : index
    %c0_0 = arith.constant 0 : index
    %0 = vector.load %arg1[%c0, %c0_0] : memref<8x216xbf16, #tpu.memory_space<vmem>>, vector<8x216xbf16>
    %c0_1 = arith.constant 0 : index
    %c0_2 = arith.constant 0 : index
    %1 = vector.load %arg2[%c0_1, %c0_2] : memref<216x128xbf16, #tpu.memory_space<vmem>>, vector<216x128xbf16>
    %cst = arith.constant dense<0.000000e+00> : vector<8x128xf32>
    %2 = tpu.matmul %0, %1, %cst {dimension_numbers = #tpu.dot_dimension_numbers<[1], [0], [0], [1], [0, 0, 1, 1], [], []>} : vector<8x216xbf16>, vector<216x128xbf16>, vector<8x128xf32> -> vector<8x128xf32>
    %c0_3 = arith.constant 0 : index
    %c0_4 = arith.constant 0 : index
    %3 = vector.load %arg3[%c0_3, %c0_4] : memref<8x1xf32, #tpu.memory_space<vmem>>, vector<8x1xf32>
    %4 = vector.broadcast %3 : vector<8x1xf32> to vector<8x128xf32>
    %5 = arith.addf %2, %4 : vector<8x128xf32>
    %c0_5 = arith.constant 0 : index
    %c0_6 = arith.constant 0 : index
    %6 = vector.load %arg4[%c0_5, %c0_6] : memref<8x128xf32, #tpu.memory_space<vmem>>, vector<8x128xf32>
    tpu.vector_store %arg4[%c0_5, %c0_6], %5 {strides = array<i32>} : memref<8x128xf32, #tpu.memory_space<vmem>>, vector<8x128xf32>,
    return
  }
  func.func @transform_0(%arg0: i32) -> (i32, i32) {
    %c0_i32 = arith.constant 0 : i32
    %c0_i32_0 = arith.constant 0 : i32
    %c0_i32_1 = arith.constant 0 : i32
    return %c0_i32, %c0_i32_0 : i32, i32
  }
  func.func @transform_1(%arg0: i32) -> (i32, i32) {
    %c0_i32 = arith.constant 0 : i32
    %c0_i32_0 = arith.constant 0 : i32
    return %c0_i32, %arg0 : i32, i32
  }
  func.func @transform_2(%arg0: i32) -> (i32, i32) {
    %c0_i32 = arith.constant 0 : i32
    %c0_i32_0 = arith.constant 0 : i32
    %c0_i32_1 = arith.constant 0 : i32
    return %c0_i32, %c0_i32_0 : i32, i32
  }
  func.func @transform_3(%arg0: i32) -> (i32, i32) {
    %c0_i32 = arith.constant 0 : i32
    %c0_i32_0 = arith.constant 0 : i32
    return %c0_i32, %arg0 : i32, i32
  }
}

module attributes {stable_mosaic.version = 11 : i64} {
  func.func @_matmul_bias_kernel(%arg0: i32, %arg1: memref<64x216xbf16, #tpu.memory_space<vmem>>, %arg2: memref<216x128xbf16, #tpu.memory_space<vmem>>, %arg3: memref<64x1xf32, #tpu.memory_space<vmem>>, %arg4: memref<64x128xf32, #tpu.memory_space<vmem>>) attributes {dimension_semantics = [#tpu.dimension_semantics<parallel>], iteration_bounds = array<i64: 1>, scalar_prefetch = 0 : i64, scratch_operands = 0 : i64, tpu.core_type = #tpu.core_type<tc>, window_params = [{pipeline_mode = #tpu.pipeline_mode<synchronous>, transform_indices = @transform_0, window_bounds = array<i64: 64, 216>}, {transform_indices = @transform_1, window_bounds = array<i64: 216, 128>}, {pipeline_mode = #tpu.pipeline_mode<synchronous>, transform_indices = @transform_2, window_bounds = array<i64: 64, 1>}, {transform_indices = @transform_3, window_bounds = array<i64: 64, 128>}]} {
    %c0 = arith.constant 0 : index
    %c0_0 = arith.constant 0 : index
    %0 = vector.load %arg1[%c0, %c0_0] : memref<64x216xbf16, #tpu.memory_space<vmem>>, vector<64x216xbf16>
    %c0_1 = arith.constant 0 : index
    %c0_2 = arith.constant 0 : index
    %1 = vector.load %arg2[%c0_1, %c0_2] : memref<216x128xbf16, #tpu.memory_space<vmem>>, vector<216x128xbf16>
    %cst = arith.constant dense<0.000000e+00> : vector<64x128xf32>
    %2 = tpu.matmul %0, %1, %cst {dimension_numbers = #tpu.dot_dimension_numbers<[1], [0], [0], [1], [0, 0, 1, 1], [], []>} : vector<64x216xbf16>, vector<216x128xbf16>, vector<64x128xf32> -> vector<64x128xf32>
    %c0_3 = arith.constant 0 : index
    %c0_4 = arith.constant 0 : index
    %3 = vector.load %arg3[%c0_3, %c0_4] : memref<64x1xf32, #tpu.memory_space<vmem>>, vector<64x1xf32>
    %4 = vector.broadcast %3 : vector<64x1xf32> to vector<64x128xf32>
    %5 = arith.addf %2, %4 : vector<64x128xf32>
    %c0_5 = arith.constant 0 : index
    %c0_6 = arith.constant 0 : index
    %6 = vector.load %arg4[%c0_5, %c0_6] : memref<64x128xf32, #tpu.memory_space<vmem>>, vector<64x128xf32>
    tpu.vector_store %arg4[%c0_5, %c0_6], %5 {strides = array<i32>} : memref<64x128xf32, #tpu.memory_space<vmem>>, vector<64x128xf32>,
    return
  }
  func.func @transform_0(%arg0: i32) -> (i32, i32) {
    %c0_i32 = arith.constant 0 : i32
    %c0_i32_0 = arith.constant 0 : i32
    %c0_i32_1 = arith.constant 0 : i32
    return %c0_i32, %c0_i32_0 : i32, i32
  }
  func.func @transform_1(%arg0: i32) -> (i32, i32) {
    %c0_i32 = arith.constant 0 : i32
    %c0_i32_0 = arith.constant 0 : i32
    return %c0_i32, %arg0 : i32, i32
  }
  func.func @transform_2(%arg0: i32) -> (i32, i32) {
    %c0_i32 = arith.constant 0 : i32
    %c0_i32_0 = arith.constant 0 : i32
    %c0_i32_1 = arith.constant 0 : i32
    return %c0_i32, %c0_i32_0 : i32, i32
  }
  func.func @transform_3(%arg0: i32) -> (i32, i32) {
    %c0_i32 = arith.constant 0 : i32
    %c0_i32_0 = arith.constant 0 : i32
    return %c0_i32, %arg0 : i32, i32
  }
}

module attributes {stable_mosaic.version = 11 : i64} {
  func.func @_matmul_bias_kernel(%arg0: i32, %arg1: memref<64x216xbf16, #tpu.memory_space<vmem>>, %arg2: memref<216x256xbf16, #tpu.memory_space<vmem>>, %arg3: memref<64x1xf32, #tpu.memory_space<vmem>>, %arg4: memref<64x256xf32, #tpu.memory_space<vmem>>) attributes {dimension_semantics = [#tpu.dimension_semantics<parallel>], iteration_bounds = array<i64: 4>, scalar_prefetch = 0 : i64, scratch_operands = 0 : i64, tpu.core_type = #tpu.core_type<tc>, window_params = [{pipeline_mode = #tpu.pipeline_mode<synchronous>, transform_indices = @transform_0, window_bounds = array<i64: 64, 216>}, {transform_indices = @transform_1, window_bounds = array<i64: 216, 256>}, {pipeline_mode = #tpu.pipeline_mode<synchronous>, transform_indices = @transform_2, window_bounds = array<i64: 64, 1>}, {transform_indices = @transform_3, window_bounds = array<i64: 64, 256>}]} {
    %c0 = arith.constant 0 : index
    %c0_0 = arith.constant 0 : index
    %0 = vector.load %arg1[%c0, %c0_0] : memref<64x216xbf16, #tpu.memory_space<vmem>>, vector<64x216xbf16>
    %c0_1 = arith.constant 0 : index
    %c0_2 = arith.constant 0 : index
    %1 = vector.load %arg2[%c0_1, %c0_2] : memref<216x256xbf16, #tpu.memory_space<vmem>>, vector<216x256xbf16>
    %cst = arith.constant dense<0.000000e+00> : vector<64x256xf32>
    %2 = tpu.matmul %0, %1, %cst {dimension_numbers = #tpu.dot_dimension_numbers<[1], [0], [0], [1], [0, 0, 1, 1], [], []>} : vector<64x216xbf16>, vector<216x256xbf16>, vector<64x256xf32> -> vector<64x256xf32>
    %c0_3 = arith.constant 0 : index
    %c0_4 = arith.constant 0 : index
    %3 = vector.load %arg3[%c0_3, %c0_4] : memref<64x1xf32, #tpu.memory_space<vmem>>, vector<64x1xf32>
    %4 = vector.broadcast %3 : vector<64x1xf32> to vector<64x256xf32>
    %5 = arith.addf %2, %4 : vector<64x256xf32>
    %c0_5 = arith.constant 0 : index
    %c0_6 = arith.constant 0 : index
    %6 = vector.load %arg4[%c0_5, %c0_6] : memref<64x256xf32, #tpu.memory_space<vmem>>, vector<64x256xf32>
    tpu.vector_store %arg4[%c0_5, %c0_6], %5 {strides = array<i32>} : memref<64x256xf32, #tpu.memory_space<vmem>>, vector<64x256xf32>,
    return
  }
  func.func @transform_0(%arg0: i32) -> (i32, i32) {
    %c0_i32 = arith.constant 0 : i32
    %c0_i32_0 = arith.constant 0 : i32
    %c0_i32_1 = arith.constant 0 : i32
    return %c0_i32, %c0_i32_0 : i32, i32
  }
  func.func @transform_1(%arg0: i32) -> (i32, i32) {
    %c0_i32 = arith.constant 0 : i32
    %c0_i32_0 = arith.constant 0 : i32
    return %c0_i32, %arg0 : i32, i32
  }
  func.func @transform_2(%arg0: i32) -> (i32, i32) {
    %c0_i32 = arith.constant 0 : i32
    %c0_i32_0 = arith.constant 0 : i32
    %c0_i32_1 = arith.constant 0 : i32
    return %c0_i32, %c0_i32_0 : i32, i32
  }
  func.func @transform_3(%arg0: i32) -> (i32, i32) {
    %c0_i32 = arith.constant 0 : i32
    %c0_i32_0 = arith.constant 0 : i32
    return %c0_i32, %arg0 : i32, i32
  }
}

module attributes {stable_mosaic.version = 11 : i64} {
  func.func @_inorm_act_kernel(%arg0: i32, %arg1: memref<8x4096xf32, #tpu.memory_space<vmem>>, %arg2: memref<8x4096xf32, #tpu.memory_space<vmem>>) attributes {dimension_semantics = [#tpu.dimension_semantics<parallel>], iteration_bounds = array<i64: 2>, scalar_prefetch = 0 : i64, scratch_operands = 0 : i64, tpu.core_type = #tpu.core_type<tc>, window_params = [{transform_indices = @transform_0, window_bounds = array<i64: 8, 4096>}, {transform_indices = @transform_1, window_bounds = array<i64: 8, 4096>}]} {
    %c0 = arith.constant 0 : index
    %c0_0 = arith.constant 0 : index
    %0 = vector.load %arg1[%c0, %c0_0] : memref<8x4096xf32, #tpu.memory_space<vmem>>, vector<8x4096xf32>
    %cst = arith.constant dense<0.000000e+00> : vector<8xf32>
    %1 = vector.multi_reduction <add>, %0, %cst [1] : vector<8x4096xf32> to vector<8xf32>
    %2 = vector.shape_cast %1 : vector<8xf32> to vector<8x1xf32>
    %cst_1 = arith.constant 4.096000e+03 : f32
    %3 = vector.broadcast %cst_1 : f32 to vector<8x1xf32>
    %4 = arith.divf %2, %3 : vector<8x1xf32>
    %5 = vector.broadcast %4 : vector<8x1xf32> to vector<8x4096xf32>
    %6 = arith.subf %0, %5 : vector<8x4096xf32>
    %7 = arith.mulf %6, %6 : vector<8x4096xf32>
    %cst_2 = arith.constant dense<0.000000e+00> : vector<8xf32>
    %8 = vector.multi_reduction <add>, %7, %cst_2 [1] : vector<8x4096xf32> to vector<8xf32>
    %9 = vector.shape_cast %8 : vector<8xf32> to vector<8x1xf32>
    %cst_3 = arith.constant 4.096000e+03 : f32
    %10 = vector.broadcast %cst_3 : f32 to vector<8x1xf32>
    %11 = arith.divf %9, %10 : vector<8x1xf32>
    %cst_4 = arith.constant 9.99999974E-6 : f32
    %12 = vector.broadcast %cst_4 : f32 to vector<8x1xf32>
    %13 = arith.addf %11, %12 : vector<8x1xf32>
    %14 = math.rsqrt %13 : vector<8x1xf32>
    %15 = vector.broadcast %14 : vector<8x1xf32> to vector<8x4096xf32>
    %16 = arith.mulf %6, %15 : vector<8x4096xf32>
    %cst_5 = arith.constant 0.000000e+00 : f32
    %17 = vector.broadcast %cst_5 : f32 to vector<8x4096xf32>
    %18 = arith.cmpf oge, %16, %17 : vector<8x4096xf32>
    %cst_6 = arith.constant 2.000000e-01 : f32
    %19 = vector.broadcast %cst_6 : f32 to vector<8x4096xf32>
    %20 = arith.mulf %19, %16 : vector<8x4096xf32>
    %21 = arith.select %18, %16, %20 : vector<8x4096xi1>, vector<8x4096xf32>
    %c0_7 = arith.constant 0 : index
    %c0_8 = arith.constant 0 : index
    %22 = vector.load %arg2[%c0_7, %c0_8] : memref<8x4096xf32, #tpu.memory_space<vmem>>, vector<8x4096xf32>
    tpu.vector_store %arg2[%c0_7, %c0_8], %21 {strides = array<i32>} : memref<8x4096xf32, #tpu.memory_space<vmem>>, vector<8x4096xf32>,
    return
  }
  func.func @transform_0(%arg0: i32) -> (i32, i32) {
    %c0_i32 = arith.constant 0 : i32
    %c0_i32_0 = arith.constant 0 : i32
    return %arg0, %c0_i32 : i32, i32
  }
  func.func @transform_1(%arg0: i32) -> (i32, i32) {
    %c0_i32 = arith.constant 0 : i32
    %c0_i32_0 = arith.constant 0 : i32
    return %arg0, %c0_i32 : i32, i32
  }
}

module attributes {stable_mosaic.version = 11 : i64} {
  func.func @_matmul_bias_kernel(%arg0: i32, %arg1: memref<4x8xbf16, #tpu.memory_space<vmem>>, %arg2: memref<8x1024xbf16, #tpu.memory_space<vmem>>, %arg3: memref<4x1xf32, #tpu.memory_space<vmem>>, %arg4: memref<4x1024xf32, #tpu.memory_space<vmem>>) attributes {dimension_semantics = [#tpu.dimension_semantics<parallel>], iteration_bounds = array<i64: 8>, scalar_prefetch = 0 : i64, scratch_operands = 0 : i64, tpu.core_type = #tpu.core_type<tc>, window_params = [{pipeline_mode = #tpu.pipeline_mode<synchronous>, transform_indices = @transform_0, window_bounds = array<i64: 4, 8>}, {transform_indices = @transform_1, window_bounds = array<i64: 8, 1024>}, {pipeline_mode = #tpu.pipeline_mode<synchronous>, transform_indices = @transform_2, window_bounds = array<i64: 4, 1>}, {transform_indices = @transform_3, window_bounds = array<i64: 4, 1024>}]} {
    %c0 = arith.constant 0 : index
    %c0_0 = arith.constant 0 : index
    %0 = vector.load %arg1[%c0, %c0_0] : memref<4x8xbf16, #tpu.memory_space<vmem>>, vector<4x8xbf16>
    %c0_1 = arith.constant 0 : index
    %c0_2 = arith.constant 0 : index
    %1 = vector.load %arg2[%c0_1, %c0_2] : memref<8x1024xbf16, #tpu.memory_space<vmem>>, vector<8x1024xbf16>
    %cst = arith.constant dense<0.000000e+00> : vector<4x1024xf32>
    %2 = tpu.matmul %0, %1, %cst {dimension_numbers = #tpu.dot_dimension_numbers<[1], [0], [0], [1], [0, 0, 1, 1], [], []>} : vector<4x8xbf16>, vector<8x1024xbf16>, vector<4x1024xf32> -> vector<4x1024xf32>
    %c0_3 = arith.constant 0 : index
    %c0_4 = arith.constant 0 : index
    %3 = vector.load %arg3[%c0_3, %c0_4] : memref<4x1xf32, #tpu.memory_space<vmem>>, vector<4x1xf32>
    %4 = vector.broadcast %3 : vector<4x1xf32> to vector<4x1024xf32>
    %5 = arith.addf %2, %4 : vector<4x1024xf32>
    %c0_5 = arith.constant 0 : index
    %c0_6 = arith.constant 0 : index
    %6 = vector.load %arg4[%c0_5, %c0_6] : memref<4x1024xf32, #tpu.memory_space<vmem>>, vector<4x1024xf32>
    tpu.vector_store %arg4[%c0_5, %c0_6], %5 {strides = array<i32>} : memref<4x1024xf32, #tpu.memory_space<vmem>>, vector<4x1024xf32>,
    return
  }
  func.func @transform_0(%arg0: i32) -> (i32, i32) {
    %c0_i32 = arith.constant 0 : i32
    %c0_i32_0 = arith.constant 0 : i32
    %c0_i32_1 = arith.constant 0 : i32
    return %c0_i32, %c0_i32_0 : i32, i32
  }
  func.func @transform_1(%arg0: i32) -> (i32, i32) {
    %c0_i32 = arith.constant 0 : i32
    %c0_i32_0 = arith.constant 0 : i32
    return %c0_i32, %arg0 : i32, i32
  }
  func.func @transform_2(%arg0: i32) -> (i32, i32) {
    %c0_i32 = arith.constant 0 : i32
    %c0_i32_0 = arith.constant 0 : i32
    %c0_i32_1 = arith.constant 0 : i32
    return %c0_i32, %c0_i32_0 : i32, i32
  }
  func.func @transform_3(%arg0: i32) -> (i32, i32) {
    %c0_i32 = arith.constant 0 : i32
    %c0_i32_0 = arith.constant 0 : i32
    return %c0_i32, %arg0 : i32, i32
  }
}

</mosaic_0001>

<llo_original>
// kernel: unet_block_outer_forward.9
$region0: #{unet_block_outer_forward.9}
  #allocation0 [shape = 'u32[]', space=smem, size = 0x4, offset = 0x4, fixed_abs, tag = 'smem constant byte address 0x4 - core index']
  #allocation1 [shape = 'u32[144,128]{1,0:T(1,128)}', space=vmem, size = 0x12000, scoped, tag = 'internal scratch']
  %s0 = inlined_call_operand.vmem [shape: f32[16,64], index: 0, kind: input, shape index: {}]
  %s1 = inlined_call_operand.vmem [shape: f32[16,64], index: 1, kind: output, shape index: {}]
  %s2 = sld [smem:[#allocation0]]
  $region37: #{unet_block_outer_forward.9} parent=0
    _
  %s4 = ssub.s32 1, %s2
  %s5 = scalar_select 0, %s4, %s2
  loop: start=0, step=1, limit=4
  $region2: #{unet_block_outer_forward.9} parent=0 // loop_pre_header
    _
  $region3: #{unet_block_outer_forward.9} parent=0 // loop_header
    %s7 = sphi 0, %s11
    %p8 = scmp.ge.s32.totalorder %s7, 4
    %s17 = sphi 0, %s19
    %s20 = sphi 0, %s17
    %s21 = sphi 0, %s20
    %s37 = sphi 0, %s21
    %s43 = sphi 0, %s45
    %s46 = sphi 0, %s43
    %s47 = sphi 0, %s46
    %s63 = sphi 0, %s47
  $region4: #{unet_block_outer_forward.9} parent=0 // loop_header_branch
    %10 = sbr.rel (%p8) target = $region8
  $region5: #{unet_block_outer_forward.9} parent=0 // loop_body
    %s12 = ssub.s32 %s7, 1
    %s13 = ssub.s32 %s7, 2
    %s14 = sadd.s32 %s7, 1
    %s15 = ssub.s32 %s7, %s14
    %p16 = scmp.eq.s32.totalorder %s15, 0
    %s18 = sadd.s32 %s17, 1
    %s19 = scalar_select %p16, %s17, %s18
    %p22 = pneg %p16
    %p23 = scmp.eq.s32.totalorder %s7, 1
    %p24 = por %p22, %p23
    %p25 = scmp.ne.s32.totalorder %s17, %s20
    %p26 = scmp.eq.s32.totalorder %s7, 0
    %p27 = por %p25, %p26
    %p28 = scmp.ne.s32.totalorder %s17, %s20
    %p29 = scmp.eq.s32.totalorder %s12, 1
    %p30 = por %p28, %p29
    %p31 = scmp.ne.s32.totalorder %s20, %s21
    %p32 = scmp.eq.s32.totalorder %s12, 0
    %p33 = por %p31, %p32
    %p34 = scmp.ne.s32.totalorder %s20, %s21
    %p35 = scmp.eq.s32.totalorder %s13, 1
    %p36 = por %p34, %p35
    %p38 = scmp.ne.s32.totalorder %s21, %s37
    %p39 = scmp.eq.s32.totalorder %s13, 0
    %p40 = por %p38, %p39
    %s41 = ssub.s32 %s7, %s14
    %p42 = scmp.eq.s32.totalorder %s41, 0
    %s44 = sadd.s32 %s43, 1
    %s45 = scalar_select %p42, %s43, %s44
    %p48 = pneg %p42
    %p49 = scmp.eq.s32.totalorder %s7, 1
    %p50 = por %p48, %p49
    %p51 = scmp.ne.s32.totalorder %s43, %s46
    %p52 = scmp.eq.s32.totalorder %s7, 0
    %p53 = por %p51, %p52
    %p54 = scmp.ne.s32.totalorder %s43, %s46
    %p55 = scmp.eq.s32.totalorder %s12, 1
    %p56 = por %p54, %p55
    %p57 = scmp.ne.s32.totalorder %s46, %s47
    %p58 = scmp.eq.s32.totalorder %s12, 0
    %p59 = por %p57, %p58
    %p60 = scmp.ne.s32.totalorder %s46, %s47
    %p61 = scmp.eq.s32.totalorder %s13, 1
    %p62 = por %p60, %p61
    %p64 = scmp.ne.s32.totalorder %s47, %s63
    %p65 = scmp.eq.s32.totalorder %s13, 0
    %p66 = por %p64, %p65
    %p67 = scmp.le.s32.totalorder 1, %s7
    %p68 = scmp.lt.s32.totalorder %s7, 3
    %p69 = pnand %p67, %p68
    %p70 = pneg %p69
    // Predicated region
    $region9: #{unet_block_outer_forward.9} parent=5 // pred_check
      _
    $region10: #{unet_block_outer_forward.9} parent=5 // pred_check_branch
      %72 = sbr.rel (%p69) target = $region12
    $region11: #{unet_block_outer_forward.9} parent=5 // pred_region
      %s73 = ssub.s32 %s7, 1
    $region12: #{unet_block_outer_forward.9} parent=5 // pred_fallthru
      _
    %p74 = scmp.lt.s32.totalorder %s7, 2
    // Predicated region
    $region13: #{unet_block_outer_forward.9} parent=5 // pred_check
      %p75 = pneg %p74
    $region14: #{unet_block_outer_forward.9} parent=5 // pred_check_branch
      %77 = sbr.rel (%p75) target = $region16
    $region15: #{unet_block_outer_forward.9} parent=5 // pred_region
      // Predicated region
      $region17: #{unet_block_outer_forward.9} parent=15 // pred_check
        %p78 = pneg %p27
      $region18: #{unet_block_outer_forward.9} parent=15 // pred_check_branch
        %80 = sbr.rel (%p78) target = $region20
      $region19: #{unet_block_outer_forward.9} parent=15 // pred_region
        %p81 = scmp.lt.s32.totalorder %s7, 1
        %s82 = scalar_select %p81, %s7, 1
        %s83 = smul.addr %s82, 8
        %s84 = scalar_lea.vmem %s0, %s83
      $region20: #{unet_block_outer_forward.9} parent=15 // pred_fallthru
        _
    $region16: #{unet_block_outer_forward.9} parent=5 // pred_fallthru
      _
    %p85 = scmp.le.s32.totalorder 1, %s7
    %p86 = scmp.lt.s32.totalorder %s7, 3
    %p87 = pnand %p85, %p86
    %p88 = pneg %p87
    // Predicated region
    $region21: #{unet_block_outer_forward.9} parent=5 // pred_check
      _
    $region22: #{unet_block_outer_forward.9} parent=5 // pred_check_branch
      %90 = sbr.rel (%p87) target = $region24
    $region23: #{unet_block_outer_forward.9} parent=5 // pred_region
      %s91 = ssub.s32 %s7, 1
      %p92 = scmp.lt.s32.totalorder %s12, 1
      %s93 = scalar_select %p92, %s12, 1
      %s94 = smul.addr %s93, 8
      %s95 = scalar_lea.vmem %s0, %s94
      %p96 = pneg %p33
      %p97 = pneg %p30
      %p98 = pneg %p59
      %p99 = pneg %p56
      %p100 = scmp.lt.s32.totalorder %s12, 1
      %s101 = scalar_select %p100, %s12, 1
      %s102 = smul.addr %s101, 8
      %s103 = scalar_lea.vmem %s1, %s102
      %p104 = scmp.lt.s32.totalorder %s12, 1
      %s105 = scalar_select %p104, %s12, 1
      %s106 = smul.addr %s105, 8
      %s107 = scalar_lea.vmem %s0, %s106
      %p108 = scmp.lt.s32.totalorder %s12, 1
      %s109 = scalar_select %p108, %s12, 1
      %s110 = smul.addr %s109, 8
      %s111 = scalar_lea.vmem %s1, %s110
      %v112 = vld [vmem:[%s107] sm:$0xff]
      %vm113 = vcmask 523264
      %v114 = vsel %vm113, %v112, 0.0
      %115 = vadd.xlane.f32.xlu0 %v114
      %v116 = vpop.xlane.xlu0 %115
      %v117 = vrcp.pop 64.0
      %v118 = vmul.f32 %v116, %v117
      %v119 = vsub.f32 %v112, %v118
      %v120 = vmul.f32 %v119, %v119
      %v121 = vsel %vm113, %v120, 0.0
      %122 = vadd.xlane.f32.xlu0 %v121
      %v123 = vpop.xlane.xlu0 %122
      %v124 = vmul.f32 %v123, %v117
      %v125 = vadd.f32 %v124, 1e-05
      %v126 = vrsqrt.pop %v125
      %v127 = vmul.f32 %v119, %v126
      %v128 = vmax.f32 %v127, 0.0
      %129 = vst.msk [vmem:[%s111] sm:$0xff] %vm113, %v128
      %p130 = scmp.lt.s32.totalorder %s12, 1
      %s131 = scalar_select %p130, %s12, 1
      %s132 = smul.addr %s131, 8
      %s133 = scalar_lea.vmem %s1, %s132
      // Predicated region
      $region25: #{unet_block_outer_forward.9} parent=23 // pred_check
        %p134 = pneg %p56
      $region26: #{unet_block_outer_forward.9} parent=23 // pred_check_branch
        %136 = sbr.rel (%p134) target = $region28
      $region27: #{unet_block_outer_forward.9} parent=23 // pred_region
        _
      $region28: #{unet_block_outer_forward.9} parent=23 // pred_fallthru
        _
    $region24: #{unet_block_outer_forward.9} parent=5 // pred_fallthru
      _
    %p137 = scmp.le.s32.totalorder 2, %s7
    // Predicated region
    $region29: #{unet_block_outer_forward.9} parent=5 // pred_check
      %p138 = pneg %p137
    $region30: #{unet_block_outer_forward.9} parent=5 // pred_check_branch
      %140 = sbr.rel (%p138) target = $region32
    $region31: #{unet_block_outer_forward.9} parent=5 // pred_region
      %s141 = ssub.s32 %s7, 2
      // Predicated region
      $region33: #{unet_block_outer_forward.9} parent=31 // pred_check
        %p142 = pneg %p62
      $region34: #{unet_block_outer_forward.9} parent=31 // pred_check_branch
        %144 = sbr.rel (%p142) target = $region36
      $region35: #{unet_block_outer_forward.9} parent=31 // pred_region
        %p145 = scmp.lt.s32.totalorder %s13, 1
        %s146 = scalar_select %p145, %s13, 1
        %s147 = smul.addr %s146, 8
        %s148 = scalar_lea.vmem %s1, %s147
      $region36: #{unet_block_outer_forward.9} parent=31 // pred_fallthru
        _
    $region32: #{unet_block_outer_forward.9} parent=5 // pred_fallthru
      _
  $region6: #{unet_block_outer_forward.9} parent=0 // loop_footer
    %s11 = sadd.s32 1, %s7
  $region7: #{unet_block_outer_forward.9} parent=0 // loop_footer_branch
    %6 = sbr.rel target = $region3
  $region8: #{unet_block_outer_forward.9} parent=0 // loop_exit
    _

// kernel: unet_block_outer_forward.8
$region0: #{unet_block_outer_forward.8}
  #allocation0 [shape = 'u32[]', space=smem, size = 0x4, offset = 0x4, fixed_abs, tag = 'smem constant byte address 0x4 - core index']
  #allocation1 [shape = 'u32[144,128]{1,0:T(1,128)}', space=vmem, size = 0x12000, scoped, tag = 'internal scratch']
  %s0 = inlined_call_operand.vmem [shape: bf16[8,256], index: 0, kind: input, shape index: {}]
  %s1 = inlined_call_operand.vmem [shape: bf16[256,128], index: 1, kind: input, shape index: {}]
  %s2 = inlined_call_operand.vmem [shape: f32[8,1], index: 2, kind: input, shape index: {}]
  %s3 = inlined_call_operand.vmem [shape: f32[8,128], index: 3, kind: output, shape index: {}]
  %s4 = sld [smem:[#allocation0]]
  $region22: #{unet_block_outer_forward.8} parent=0
    _
  %s6 = ssub.s32 1, %s4
  %s7 = scalar_select 0, %s6, %s4
  // Predicated region
  $region2: #{unet_block_outer_forward.8} parent=0 // pred_check
    _
  $region3: #{unet_block_outer_forward.8} parent=0 // pred_check_branch
    %9 = sbr.rel (0) target = $region5
  $region4: #{unet_block_outer_forward.8} parent=0 // pred_region
    _
  $region5: #{unet_block_outer_forward.8} parent=0 // pred_fallthru
    _
  // Predicated region
  $region6: #{unet_block_outer_forward.8} parent=0 // pred_check
    _
  $region7: #{unet_block_outer_forward.8} parent=0 // pred_check_branch
    %11 = sbr.rel (0) target = $region9
  $region8: #{unet_block_outer_forward.8} parent=0 // pred_region
    _
  $region9: #{unet_block_outer_forward.8} parent=0 // pred_fallthru
    _
  // Predicated region
  $region10: #{unet_block_outer_forward.8} parent=0 // pred_check
    _
  $region11: #{unet_block_outer_forward.8} parent=0 // pred_check_branch
    %13 = sbr.rel (0) target = $region13
  $region12: #{unet_block_outer_forward.8} parent=0 // pred_region
    _
  $region13: #{unet_block_outer_forward.8} parent=0 // pred_fallthru
    _
  %v15 = vld [vmem:[%s0] sm:$0xff]
  %v16 = vld [vmem:[%s1] sm:$0xf]
  %v17 = vld [vmem:[%s1 + $0x4] sm:$0xf]
  %v18 = vld [vmem:[%s1 + $0x8] sm:$0xf]
  %v19 = vld [vmem:[%s1 + $0xc] sm:$0xf]
  %v20 = vld [vmem:[%s1 + $0x10] sm:$0xf]
  %v21 = vld [vmem:[%s1 + $0x14] sm:$0xf]
  %v22 = vld [vmem:[%s1 + $0x18] sm:$0xf]
  %v23 = vld [vmem:[%s1 + $0x1c] sm:$0xf]
  %v24 = vld [vmem:[%s1 + $0x20] sm:$0xf]
  %v25 = vld [vmem:[%s1 + $0x24] sm:$0xf]
  %v26 = vld [vmem:[%s1 + $0x28] sm:$0xf]
  %v27 = vld [vmem:[%s1 + $0x2c] sm:$0xf]
  %v28 = vld [vmem:[%s1 + $0x30] sm:$0xf]
  %v29 = vld [vmem:[%s1 + $0x34] sm:$0xf]
  %v30 = vld [vmem:[%s1 + $0x38] sm:$0xf]
  %v31 = vld [vmem:[%s1 + $0x3c] sm:$0xf]
  %v32 = vld [vmem:[%s1 + $0x40] sm:$0xf]
  %v33 = vld [vmem:[%s1 + $0x44] sm:$0xf]
  %v34 = vld [vmem:[%s1 + $0x48] sm:$0xf]
  %v35 = vld [vmem:[%s1 + $0x4c] sm:$0xf]
  %v36 = vld [vmem:[%s1 + $0x50] sm:$0xf]
  %v37 = vld [vmem:[%s1 + $0x54] sm:$0xf]
  %v38 = vld [vmem:[%s1 + $0x58] sm:$0xf]
  %v39 = vld [vmem:[%s1 + $0x5c] sm:$0xf]
  %v40 = vld [vmem:[%s1 + $0x60] sm:$0xf]
  %v41 = vld [vmem:[%s1 + $0x64] sm:$0xf]
  %v42 = vld [vmem:[%s1 + $0x68] sm:$0xf]
  %v43 = vld [vmem:[%s1 + $0x6c] sm:$0xf]
  %v44 = vld [vmem:[%s1 + $0x70] sm:$0xf]
  %v45 = vld [vmem:[%s1 + $0x74] sm:$0xf]
  %v46 = vld [vmem:[%s1 + $0x78] sm:$0xf]
  %v47 = vld [vmem:[%s1 + $0x7c] sm:$0xf]
  %v48 = vld [vmem:[%s2] sm:$0xff]
  %50 = vset.pattern.permute.xlu0 0
  %51 = vperm.xlu0 %50, %v48
  %v52 = vpop.permute.xlu0 %51
  %v55 = vunpack.c.l.b16 %v15
  %v56 = vunpack.c.h.b16 %v15
  %v57 = vpack.c.b16 %v55, %v55
  %v58 = vpack.c.b16 %v56, %v56
  %v93 = vunpack.c.l.b16 %v16
  %v94 = vunpack.c.l.b16 %v17
  %v95 = vunpack.c.l.b16 %v18
  %v96 = vunpack.c.l.b16 %v19
  %v97 = vunpack.c.l.b16 %v20
  %v98 = vunpack.c.l.b16 %v21
  %v99 = vunpack.c.l.b16 %v22
  %v100 = vunpack.c.l.b16 %v23
  %v101 = vunpack.c.l.b16 %v24
  %v102 = vunpack.c.l.b16 %v25
  %v103 = vunpack.c.l.b16 %v26
  %v104 = vunpack.c.l.b16 %v27
  %v105 = vunpack.c.l.b16 %v28
  %v106 = vunpack.c.l.b16 %v29
  %v107 = vunpack.c.l.b16 %v30
  %v108 = vunpack.c.l.b16 %v31
  %v109 = vunpack.c.l.b16 %v32
  %v110 = vunpack.c.l.b16 %v33
  %v111 = vunpack.c.l.b16 %v34
  %v112 = vunpack.c.l.b16 %v35
  %v113 = vunpack.c.l.b16 %v36
  %v114 = vunpack.c.l.b16 %v37
  %v115 = vunpack.c.l.b16 %v38
  %v116 = vunpack.c.l.b16 %v39
  %v117 = vunpack.c.l.b16 %v40
  %v118 = vunpack.c.l.b16 %v41
  %v119 = vunpack.c.l.b16 %v42
  %v120 = vunpack.c.l.b16 %v43
  %v121 = vunpack.c.l.b16 %v44
  %v122 = vunpack.c.l.b16 %v45
  %v123 = vunpack.c.l.b16 %v46
  %v124 = vunpack.c.l.b16 %v47
  %v125 = vpack.c.b16 %v94, %v93
  %v126 = vpack.c.b16 %v96, %v95
  %v127 = vpack.c.b16 %v98, %v97
  %v128 = vpack.c.b16 %v100, %v99
  %v129 = vpack.c.b16 %v102, %v101
  %v130 = vpack.c.b16 %v104, %v103
  %v131 = vpack.c.b16 %v106, %v105
  %v132 = vpack.c.b16 %v108, %v107
  %v133 = vpack.c.b16 %v110, %v109
  %v134 = vpack.c.b16 %v112, %v111
  %v135 = vpack.c.b16 %v114, %v113
  %v136 = vpack.c.b16 %v116, %v115
  %v137 = vpack.c.b16 %v118, %v117
  %v138 = vpack.c.b16 %v120, %v119
  %v139 = vpack.c.b16 %v122, %v121
  %v140 = vpack.c.b16 %v124, %v123
  %157 = vmatprep.subr.bf16.mxu0 0
  %158 = vmatpush1.bf16.msra.mxu0 %v132
  %159 = vmatprep.subr.bf16.mxu0 0
  %160 = vmatpush1.bf16.msra.mxu0 %v131
  %161 = vmatprep.subr.bf16.mxu0 0
  %162 = vmatpush1.bf16.msra.mxu0 %v130
  %163 = vmatprep.subr.bf16.mxu0 0
  %164 = vmatpush1.bf16.msra.mxu0 %v129
  %165 = vmatprep.subr.bf16.mxu0 0
  %166 = vmatpush1.bf16.msra.mxu0 %v128
  %167 = vmatprep.subr.bf16.mxu0 0
  %168 = vmatpush1.bf16.msra.mxu0 %v127
  %169 = vmatprep.subr.bf16.mxu0 0
  %170 = vmatpush1.bf16.msra.mxu0 %v126
  %171 = vmatprep.subr.bf16.mxu0 0
  %172 = vmatpush1.bf16.msra.mxu0 %v125
  %173 = vmatprep.subr.bf16.mxu0 0
  %174 = vmatpush2.bf16.msra.mxu0 %v140
  %175 = vmatprep.subr.bf16.mxu0 0
  %176 = vmatpush2.bf16.msra.mxu0 %v139
  %177 = vmatprep.subr.bf16.mxu0 0
  %178 = vmatpush2.bf16.msra.mxu0 %v138
  %179 = vmatprep.subr.bf16.mxu0 0
  %180 = vmatpush2.bf16.msra.mxu0 %v137
  %181 = vmatprep.subr.bf16.mxu0 0
  %182 = vmatpush2.bf16.msra.mxu0 %v136
  %183 = vmatprep.subr.bf16.mxu0 0
  %184 = vmatpush2.bf16.msra.mxu0 %v135
  %185 = vmatprep.subr.bf16.mxu0 0
  %186 = vmatpush2.bf16.msra.mxu0 %v134
  %187 = vmatprep.subr.bf16.mxu0 0
  %188 = vmatpush2.bf16.msra.mxu0 %v133
  %189 = vmatprep.mubr.bf16.mxu0 %v58
  %190 = vmatmul.mubr.bf16.gmra.mxu0 %v57
  %v191 = vpop.f32.mrf.mxu0
  %v192 = vadd.f32 %v52, %v191
  %v193 = vpop.f32.mrf.mxu0
  %v194 = vpop.f32.mrf.mxu0
  %v195 = vpop.f32.mrf.mxu0
  %196 = vdwg.mxu0
  %197 = vst [vmem:[%s3] sm:$0xff] %v192
  // Predicated region
  $region14: #{unet_block_outer_forward.8} parent=0 // pred_check
    _
  $region15: #{unet_block_outer_forward.8} parent=0 // pred_check_branch
    %199 = sbr.rel (0) target = $region17
  $region16: #{unet_block_outer_forward.8} parent=0 // pred_region
    _
  $region17: #{unet_block_outer_forward.8} parent=0 // pred_fallthru
    _
  // Predicated region
  $region18: #{unet_block_outer_forward.8} parent=0 // pred_check
    _
  $region19: #{unet_block_outer_forward.8} parent=0 // pred_check_branch
    %201 = sbr.rel (0) target = $region21
  $region20: #{unet_block_outer_forward.8} parent=0 // pred_region
    _
  $region21: #{unet_block_outer_forward.8} parent=0 // pred_fallthru
    _

// kernel: unet_block_outer_forward.10
$region0: #{unet_block_outer_forward.10}
  #allocation0 [shape = 'u32[]', space=smem, size = 0x4, offset = 0x4, fixed_abs, tag = 'smem constant byte address 0x4 - core index']
  #allocation1 [shape = 'u32[144,128]{1,0:T(1,128)}', space=vmem, size = 0x12000, scoped, tag = 'internal scratch']
  %s0 = inlined_call_operand.vmem [shape: bf16[8,216], index: 0, kind: input, shape index: {}]
  %s1 = inlined_call_operand.vmem [shape: bf16[216,128], index: 1, kind: input, shape index: {}]
  %s2 = inlined_call_operand.vmem [shape: f32[8,1], index: 2, kind: input, shape index: {}]
  %s3 = inlined_call_operand.vmem [shape: f32[8,128], index: 3, kind: output, shape index: {}]
  %s4 = sld [smem:[#allocation0]]
  $region22: #{unet_block_outer_forward.10} parent=0
    _
  %s6 = ssub.s32 1, %s4
  %s7 = scalar_select 0, %s6, %s4
  // Predicated region
  $region2: #{unet_block_outer_forward.10} parent=0 // pred_check
    _
  $region3: #{unet_block_outer_forward.10} parent=0 // pred_check_branch
    %9 = sbr.rel (0) target = $region5
  $region4: #{unet_block_outer_forward.10} parent=0 // pred_region
    _
  $region5: #{unet_block_outer_forward.10} parent=0 // pred_fallthru
    _
  // Predicated region
  $region6: #{unet_block_outer_forward.10} parent=0 // pred_check
    _
  $region7: #{unet_block_outer_forward.10} parent=0 // pred_check_branch
    %11 = sbr.rel (0) target = $region9
  $region8: #{unet_block_outer_forward.10} parent=0 // pred_region
    _
  $region9: #{unet_block_outer_forward.10} parent=0 // pred_fallthru
    _
  // Predicated region
  $region10: #{unet_block_outer_forward.10} parent=0 // pred_check
    _
  $region11: #{unet_block_outer_forward.10} parent=0 // pred_check_branch
    %13 = sbr.rel (0) target = $region13
  $region12: #{unet_block_outer_forward.10} parent=0 // pred_region
    _
  $region13: #{unet_block_outer_forward.10} parent=0 // pred_fallthru
    _
  %v15 = vld [vmem:[%s0] sm:$0xff]
  %v16 = vld [vmem:[%s1] sm:$0xf]
  %v17 = vld [vmem:[%s1 + $0x4] sm:$0xf]
  %v18 = vld [vmem:[%s1 + $0x8] sm:$0xf]
  %v19 = vld [vmem:[%s1 + $0xc] sm:$0xf]
  %v20 = vld [vmem:[%s1 + $0x10] sm:$0xf]
  %v21 = vld [vmem:[%s1 + $0x14] sm:$0xf]
  %v22 = vld [vmem:[%s1 + $0x18] sm:$0xf]
  %v23 = vld [vmem:[%s1 + $0x1c] sm:$0xf]
  %v24 = vld [vmem:[%s1 + $0x20] sm:$0xf]
  %v25 = vld [vmem:[%s1 + $0x24] sm:$0xf]
  %v26 = vld [vmem:[%s1 + $0x28] sm:$0xf]
  %v27 = vld [vmem:[%s1 + $0x2c] sm:$0xf]
  %v28 = vld [vmem:[%s1 + $0x30] sm:$0xf]
  %v29 = vld [vmem:[%s1 + $0x34] sm:$0xf]
  %v30 = vld [vmem:[%s1 + $0x38] sm:$0xf]
  %v31 = vld [vmem:[%s1 + $0x3c] sm:$0xf]
  %v32 = vld [vmem:[%s1 + $0x40] sm:$0xf]
  %v33 = vld [vmem:[%s1 + $0x44] sm:$0xf]
  %v34 = vld [vmem:[%s1 + $0x48] sm:$0xf]
  %v35 = vld [vmem:[%s1 + $0x4c] sm:$0xf]
  %v36 = vld [vmem:[%s1 + $0x50] sm:$0xf]
  %v37 = vld [vmem:[%s1 + $0x54] sm:$0xf]
  %v38 = vld [vmem:[%s1 + $0x58] sm:$0xf]
  %v39 = vld [vmem:[%s1 + $0x5c] sm:$0xf]
  %v40 = vld [vmem:[%s1 + $0x60] sm:$0xf]
  %v41 = vld [vmem:[%s1 + $0x64] sm:$0xf]
  %v42 = vld [vmem:[%s1 + $0x68] sm:$0xf]
  %v43 = vld [vmem:[%s2] sm:$0xff]
  %45 = vset.pattern.permute.xlu0 0
  %46 = vperm.xlu0 %45, %v43
  %v47 = vpop.permute.xlu0 %46
  %v50 = vunpack.c.l.b16 %v15
  %v51 = vunpack.c.h.b16 %v15
  %v52 = vpack.c.b16 %v50, %v50
  %v53 = vpack.c.b16 %v51, %v51
  %v82 = vunpack.c.l.b16 %v16
  %v83 = vunpack.c.l.b16 %v17
  %v84 = vunpack.c.l.b16 %v18
  %v85 = vunpack.c.l.b16 %v19
  %v86 = vunpack.c.l.b16 %v20
  %v87 = vunpack.c.l.b16 %v21
  %v88 = vunpack.c.l.b16 %v22
  %v89 = vunpack.c.l.b16 %v23
  %v90 = vunpack.c.l.b16 %v24
  %v91 = vunpack.c.l.b16 %v25
  %v92 = vunpack.c.l.b16 %v26
  %v93 = vunpack.c.l.b16 %v27
  %v94 = vunpack.c.l.b16 %v28
  %v95 = vunpack.c.l.b16 %v29
  %v96 = vunpack.c.l.b16 %v30
  %v97 = vunpack.c.l.b16 %v31
  %v98 = vunpack.c.l.b16 %v32
  %v99 = vunpack.c.l.b16 %v33
  %v100 = vunpack.c.l.b16 %v34
  %v101 = vunpack.c.l.b16 %v35
  %v102 = vunpack.c.l.b16 %v36
  %v103 = vunpack.c.l.b16 %v37
  %v104 = vunpack.c.l.b16 %v38
  %v105 = vunpack.c.l.b16 %v39
  %v106 = vunpack.c.l.b16 %v40
  %v107 = vunpack.c.l.b16 %v41
  %v108 = vunpack.c.l.b16 %v42
  %v109 = vpack.c.b16 %v83, %v82
  %v110 = vpack.c.b16 %v85, %v84
  %v111 = vpack.c.b16 %v87, %v86
  %v112 = vpack.c.b16 %v89, %v88
  %v113 = vpack.c.b16 %v91, %v90
  %v114 = vpack.c.b16 %v93, %v92
  %v115 = vpack.c.b16 %v95, %v94
  %v116 = vpack.c.b16 %v97, %v96
  %v117 = vpack.c.b16 %v99, %v98
  %v118 = vpack.c.b16 %v101, %v100
  %v119 = vpack.c.b16 %v103, %v102
  %v120 = vpack.c.b16 %v105, %v104
  %v121 = vpack.c.b16 %v107, %v106
  %v122 = vpack.c.b16 %v108, %v108
  %vm136 = vcmask 719872
  %v138 = vsel %vm136, %v53, 0
  %vm140 = vcmask 1043456
  %v142 = vsel %vm140, %v122, 0
  %144 = vmatprep.subr.bf16.mxu0 0
  %145 = vmatpush1.bf16.msra.mxu0 %v116
  %146 = vmatprep.subr.bf16.mxu0 0
  %147 = vmatpush1.bf16.msra.mxu0 %v115
  %148 = vmatprep.subr.bf16.mxu0 0
  %149 = vmatpush1.bf16.msra.mxu0 %v114
  %150 = vmatprep.subr.bf16.mxu0 0
  %151 = vmatpush1.bf16.msra.mxu0 %v113
  %152 = vmatprep.subr.bf16.mxu0 0
  %153 = vmatpush1.bf16.msra.mxu0 %v112
  %154 = vmatprep.subr.bf16.mxu0 0
  %155 = vmatpush1.bf16.msra.mxu0 %v111
  %156 = vmatprep.subr.bf16.mxu0 0
  %157 = vmatpush1.bf16.msra.mxu0 %v110
  %158 = vmatprep.subr.bf16.mxu0 0
  %159 = vmatpush1.bf16.msra.mxu0 %v109
  %160 = vmatprep.subr.bf16.mxu0 0
  %161 = vmatpush2.bf16.msra.mxu0 0
  %162 = vmatprep.subr.bf16.mxu0 0
  %163 = vmatpush2.bf16.msra.mxu0 0
  %164 = vmatprep.subr.bf16.mxu0 0
  %165 = vmatpush2.bf16.msra.mxu0 %v142
  %166 = vmatprep.subr.bf16.mxu0 0
  %167 = vmatpush2.bf16.msra.mxu0 %v121
  %168 = vmatprep.subr.bf16.mxu0 0
  %169 = vmatpush2.bf16.msra.mxu0 %v120
  %170 = vmatprep.subr.bf16.mxu0 0
  %171 = vmatpush2.bf16.msra.mxu0 %v119
  %172 = vmatprep.subr.bf16.mxu0 0
  %173 = vmatpush2.bf16.msra.mxu0 %v118
  %174 = vmatprep.subr.bf16.mxu0 0
  %175 = vmatpush2.bf16.msra.mxu0 %v117
  %176 = vmatprep.mubr.bf16.mxu0 %v138
  %177 = vmatmul.mubr.bf16.gmra.mxu0 %v52
  %v178 = vpop.f32.mrf.mxu0
  %v179 = vadd.f32 %v47, %v178
  %v180 = vpop.f32.mrf.mxu0
  %v181 = vpop.f32.mrf.mxu0
  %v182 = vpop.f32.mrf.mxu0
  %183 = vdwg.mxu0
  %184 = vst [vmem:[%s3] sm:$0xff] %v179
  // Predicated region
  $region14: #{unet_block_outer_forward.10} parent=0 // pred_check
    _
  $region15: #{unet_block_outer_forward.10} parent=0 // pred_check_branch
    %186 = sbr.rel (0) target = $region17
  $region16: #{unet_block_outer_forward.10} parent=0 // pred_region
    _
  $region17: #{unet_block_outer_forward.10} parent=0 // pred_fallthru
    _
  // Predicated region
  $region18: #{unet_block_outer_forward.10} parent=0 // pred_check
    _
  $region19: #{unet_block_outer_forward.10} parent=0 // pred_check_branch
    %188 = sbr.rel (0) target = $region21
  $region20: #{unet_block_outer_forward.10} parent=0 // pred_region
    _
  $region21: #{unet_block_outer_forward.10} parent=0 // pred_fallthru
    _

// kernel: unet_block_outer_forward.12
$region0: #{unet_block_outer_forward.12}
  #allocation0 [shape = 'u32[]', space=smem, size = 0x4, offset = 0x4, fixed_abs, tag = 'smem constant byte address 0x4 - core index']
  #allocation1 [shape = 'u32[144,128]{1,0:T(1,128)}', space=vmem, size = 0x12000, scoped, tag = 'internal scratch']
  %s0 = inlined_call_operand.vmem [shape: bf16[64,216], index: 0, kind: input, shape index: {}]
  %s1 = inlined_call_operand.vmem [shape: bf16[216,128], index: 1, kind: input, shape index: {}]
  %s2 = inlined_call_operand.vmem [shape: f32[64,1], index: 2, kind: input, shape index: {}]
  %s3 = inlined_call_operand.vmem [shape: f32[64,128], index: 3, kind: output, shape index: {}]
  %s4 = sld [smem:[#allocation0]]
  $region22: #{unet_block_outer_forward.12} parent=0
    _
  %s6 = ssub.s32 1, %s4
  %s7 = scalar_select 0, %s6, %s4
  // Predicated region
  $region2: #{unet_block_outer_forward.12} parent=0 // pred_check
    _
  $region3: #{unet_block_outer_forward.12} parent=0 // pred_check_branch
    %9 = sbr.rel (0) target = $region5
  $region4: #{unet_block_outer_forward.12} parent=0 // pred_region
    _
  $region5: #{unet_block_outer_forward.12} parent=0 // pred_fallthru
    _
  // Predicated region
  $region6: #{unet_block_outer_forward.12} parent=0 // pred_check
    _
  $region7: #{unet_block_outer_forward.12} parent=0 // pred_check_branch
    %11 = sbr.rel (0) target = $region9
  $region8: #{unet_block_outer_forward.12} parent=0 // pred_region
    _
  $region9: #{unet_block_outer_forward.12} parent=0 // pred_fallthru
    _
  // Predicated region
  $region10: #{unet_block_outer_forward.12} parent=0 // pred_check
    _
  $region11: #{unet_block_outer_forward.12} parent=0 // pred_check_branch
    %13 = sbr.rel (0) target = $region13
  $region12: #{unet_block_outer_forward.12} parent=0 // pred_region
    _
  $region13: #{unet_block_outer_forward.12} parent=0 // pred_fallthru
    _
  %v15 = vld [vmem:[%s0] sm:$0xff]
  %v16 = vld [vmem:[%s0 + $0x8] sm:$0xff]
  %v17 = vld [vmem:[%s0 + $0x10] sm:$0xff]
  %v18 = vld [vmem:[%s0 + $0x18] sm:$0xff]
  %v19 = vld [vmem:[%s0 + $0x20] sm:$0xff]
  %v20 = vld [vmem:[%s0 + $0x28] sm:$0xff]
  %v21 = vld [vmem:[%s0 + $0x30] sm:$0xff]
  %v22 = vld [vmem:[%s0 + $0x38] sm:$0xff]
  %v23 = vld [vmem:[%s1] sm:$0xf]
  %v24 = vld [vmem:[%s1 + $0x4] sm:$0xf]
  %v25 = vld [vmem:[%s1 + $0x8] sm:$0xf]
  %v26 = vld [vmem:[%s1 + $0xc] sm:$0xf]
  %v27 = vld [vmem:[%s1 + $0x10] sm:$0xf]
  %v28 = vld [vmem:[%s1 + $0x14] sm:$0xf]
  %v29 = vld [vmem:[%s1 + $0x18] sm:$0xf]
  %v30 = vld [vmem:[%s1 + $0x1c] sm:$0xf]
  %v31 = vld [vmem:[%s1 + $0x20] sm:$0xf]
  %v32 = vld [vmem:[%s1 + $0x24] sm:$0xf]
  %v33 = vld [vmem:[%s1 + $0x28] sm:$0xf]
  %v34 = vld [vmem:[%s1 + $0x2c] sm:$0xf]
  %v35 = vld [vmem:[%s1 + $0x30] sm:$0xf]
  %v36 = vld [vmem:[%s1 + $0x34] sm:$0xf]
  %v37 = vld [vmem:[%s1 + $0x38] sm:$0xf]
  %v38 = vld [vmem:[%s1 + $0x3c] sm:$0xf]
  %v39 = vld [vmem:[%s1 + $0x40] sm:$0xf]
  %v40 = vld [vmem:[%s1 + $0x44] sm:$0xf]
  %v41 = vld [vmem:[%s1 + $0x48] sm:$0xf]
  %v42 = vld [vmem:[%s1 + $0x4c] sm:$0xf]
  %v43 = vld [vmem:[%s1 + $0x50] sm:$0xf]
  %v44 = vld [vmem:[%s1 + $0x54] sm:$0xf]
  %v45 = vld [vmem:[%s1 + $0x58] sm:$0xf]
  %v46 = vld [vmem:[%s1 + $0x5c] sm:$0xf]
  %v47 = vld [vmem:[%s1 + $0x60] sm:$0xf]
  %v48 = vld [vmem:[%s1 + $0x64] sm:$0xf]
  %v49 = vld [vmem:[%s1 + $0x68] sm:$0xf]
  %v50 = vld [vmem:[%s2] sm:$0xff]
  %v51 = vld [vmem:[%s2 + $0x8] sm:$0xff]
  %v52 = vld [vmem:[%s2 + $0x10] sm:$0xff]
  %v53 = vld [vmem:[%s2 + $0x18] sm:$0xff]
  %v54 = vld [vmem:[%s2 + $0x20] sm:$0xff]
  %v55 = vld [vmem:[%s2 + $0x28] sm:$0xff]
  %v56 = vld [vmem:[%s2 + $0x30] sm:$0xff]
  %v57 = vld [vmem:[%s2 + $0x38] sm:$0xff]
  %59 = vset.pattern.permute.xlu0 0
  %60 = vperm.xlu0 %59, %v50
  %v61 = vpop.permute.xlu0 %60
  %64 = vset.pattern.permute.xlu0 0
  %65 = vperm.xlu0 %64, %v51
  %v66 = vpop.permute.xlu0 %65
  %69 = vset.pattern.permute.xlu0 0
  %70 = vperm.xlu0 %69, %v52
  %v71 = vpop.permute.xlu0 %70
  %74 = vset.pattern.permute.xlu0 0
  %75 = vperm.xlu0 %74, %v53
  %v76 = vpop.permute.xlu0 %75
  %79 = vset.pattern.permute.xlu0 0
  %80 = vperm.xlu0 %79, %v54
  %v81 = vpop.permute.xlu0 %80
  %84 = vset.pattern.permute.xlu0 0
  %85 = vperm.xlu0 %84, %v55
  %v86 = vpop.permute.xlu0 %85
  %89 = vset.pattern.permute.xlu0 0
  %90 = vperm.xlu0 %89, %v56
  %v91 = vpop.permute.xlu0 %90
  %94 = vset.pattern.permute.xlu0 0
  %95 = vperm.xlu0 %94, %v57
  %v96 = vpop.permute.xlu0 %95
  %v106 = vunpack.c.l.b16 %v15
  %v107 = vunpack.c.h.b16 %v15
  %v108 = vunpack.c.l.b16 %v16
  %v109 = vunpack.c.h.b16 %v16
  %v110 = vunpack.c.l.b16 %v17
  %v111 = vunpack.c.h.b16 %v17
  %v112 = vunpack.c.l.b16 %v18
  %v113 = vunpack.c.h.b16 %v18
  %v114 = vunpack.c.l.b16 %v19
  %v115 = vunpack.c.h.b16 %v19
  %v116 = vunpack.c.l.b16 %v20
  %v117 = vunpack.c.h.b16 %v20
  %v118 = vunpack.c.l.b16 %v21
  %v119 = vunpack.c.h.b16 %v21
  %v120 = vunpack.c.l.b16 %v22
  %v121 = vunpack.c.h.b16 %v22
  %v122 = vpack.c.b16 %v108, %v106
  %v123 = vpack.c.b16 %v109, %v107
  %v124 = vpack.c.b16 %v112, %v110
  %v125 = vpack.c.b16 %v113, %v111
  %v126 = vpack.c.b16 %v116, %v114
  %v127 = vpack.c.b16 %v117, %v115
  %v128 = vpack.c.b16 %v120, %v118
  %v129 = vpack.c.b16 %v121, %v119
  %v161 = vunpack.c.l.b16 %v23
  %v162 = vunpack.c.l.b16 %v24
  %v163 = vunpack.c.l.b16 %v25
  %v164 = vunpack.c.l.b16 %v26
  %v165 = vunpack.c.l.b16 %v27
  %v166 = vunpack.c.l.b16 %v28
  %v167 = vunpack.c.l.b16 %v29
  %v168 = vunpack.c.l.b16 %v30
  %v169 = vunpack.c.l.b16 %v31
  %v170 = vunpack.c.l.b16 %v32
  %v171 = vunpack.c.l.b16 %v33
  %v172 = vunpack.c.l.b16 %v34
  %v173 = vunpack.c.l.b16 %v35
  %v174 = vunpack.c.l.b16 %v36
  %v175 = vunpack.c.l.b16 %v37
  %v176 = vunpack.c.l.b16 %v38
  %v177 = vunpack.c.l.b16 %v39
  %v178 = vunpack.c.l.b16 %v40
  %v179 = vunpack.c.l.b16 %v41
  %v180 = vunpack.c.l.b16 %v42
  %v181 = vunpack.c.l.b16 %v43
  %v182 = vunpack.c.l.b16 %v44
  %v183 = vunpack.c.l.b16 %v45
  %v184 = vunpack.c.l.b16 %v46
  %v185 = vunpack.c.l.b16 %v47
  %v186 = vunpack.c.l.b16 %v48
  %v187 = vunpack.c.l.b16 %v49
  %v188 = vpack.c.b16 %v162, %v161
  %v189 = vpack.c.b16 %v164, %v163
  %v190 = vpack.c.b16 %v166, %v165
  %v191 = vpack.c.b16 %v168, %v167
  %v192 = vpack.c.b16 %v170, %v169
  %v193 = vpack.c.b16 %v172, %v171
  %v194 = vpack.c.b16 %v174, %v173
  %v195 = vpack.c.b16 %v176, %v175
  %v196 = vpack.c.b16 %v178, %v177
  %v197 = vpack.c.b16 %v180, %v179
  %v198 = vpack.c.b16 %v182, %v181
  %v199 = vpack.c.b16 %v184, %v183
  %v200 = vpack.c.b16 %v186, %v185
  %v201 = vpack.c.b16 %v187, %v187
  %vm215 = vcmask 719872
  %v217 = vsel %vm215, %v123, 0
  %v220 = vsel %vm215, %v125, 0
  %v223 = vsel %vm215, %v127, 0
  %v226 = vsel %vm215, %v129, 0
  %vm228 = vcmask 1043456
  %v230 = vsel %vm228, %v201, 0
  %232 = vmatprep.subr.bf16.mxu0 0
  %233 = vmatpush1.bf16.msra.mxu0 %v195
  %234 = vmatprep.subr.bf16.mxu0 0
  %235 = vmatpush1.bf16.msra.mxu0 %v194
  %236 = vmatprep.subr.bf16.mxu0 0
  %237 = vmatpush1.bf16.msra.mxu0 %v193
  %238 = vmatprep.subr.bf16.mxu0 0
  %239 = vmatpush1.bf16.msra.mxu0 %v192
  %240 = vmatprep.subr.bf16.mxu0 0
  %241 = vmatpush1.bf16.msra.mxu0 %v191
  %242 = vmatprep.subr.bf16.mxu0 0
  %243 = vmatpush1.bf16.msra.mxu0 %v190
  %244 = vmatprep.subr.bf16.mxu0 0
  %245 = vmatpush1.bf16.msra.mxu0 %v189
  %246 = vmatprep.subr.bf16.mxu0 0
  %247 = vmatpush1.bf16.msra.mxu0 %v188
  %248 = vmatprep.subr.bf16.mxu0 0
  %249 = vmatpush2.bf16.msra.mxu0 0
  %250 = vmatprep.subr.bf16.mxu0 0
  %251 = vmatpush2.bf16.msra.mxu0 0
  %252 = vmatprep.subr.bf16.mxu0 0
  %253 = vmatpush2.bf16.msra.mxu0 %v230
  %254 = vmatprep.subr.bf16.mxu0 0
  %255 = vmatpush2.bf16.msra.mxu0 %v200
  %256 = vmatprep.subr.bf16.mxu0 0
  %257 = vmatpush2.bf16.msra.mxu0 %v199
  %258 = vmatprep.subr.bf16.mxu0 0
  %259 = vmatpush2.bf16.msra.mxu0 %v198
  %260 = vmatprep.subr.bf16.mxu0 0
  %261 = vmatpush2.bf16.msra.mxu0 %v197
  %262 = vmatprep.subr.bf16.mxu0 0
  %263 = vmatpush2.bf16.msra.mxu0 %v196
  %264 = vmatprep.mubr.bf16.mxu0 %v217
  %265 = vmatmul.mubr.bf16.gmra.mxu0 %v122
  %v266 = vpop.f32.mrf.mxu0
  %v267 = vadd.f32 %v61, %v266
  %v268 = vpop.f32.mrf.mxu0
  %v269 = vpop.f32.mrf.mxu0
  %v270 = vadd.f32 %v66, %v269
  %v271 = vpop.f32.mrf.mxu0
  %272 = vmatprep.mubr.bf16.mxu0 %v220
  %273 = vmatmul.mubr.bf16.gmra.mxu0 %v124
  %v274 = vpop.f32.mrf.mxu0
  %v275 = vadd.f32 %v71, %v274
  %v276 = vpop.f32.mrf.mxu0
  %v277 = vpop.f32.mrf.mxu0
  %v278 = vadd.f32 %v76, %v277
  %v279 = vpop.f32.mrf.mxu0
  %280 = vmatprep.mubr.bf16.mxu0 %v223
  %281 = vmatmul.mubr.bf16.gmra.mxu0 %v126
  %v282 = vpop.f32.mrf.mxu0
  %v283 = vadd.f32 %v81, %v282
  %v284 = vpop.f32.mrf.mxu0
  %v285 = vpop.f32.mrf.mxu0
  %v286 = vadd.f32 %v86, %v285
  %v287 = vpop.f32.mrf.mxu0
  %288 = vmatprep.mubr.bf16.mxu0 %v226
  %289 = vmatmul.mubr.bf16.gmra.mxu0 %v128
  %v290 = vpop.f32.mrf.mxu0
  %v291 = vadd.f32 %v91, %v290
  %v292 = vpop.f32.mrf.mxu0
  %v293 = vpop.f32.mrf.mxu0
  %v294 = vadd.f32 %v96, %v293
  %v295 = vpop.f32.mrf.mxu0
  %296 = vdwg.mxu0
  %297 = vst [vmem:[%s3] sm:$0xff] %v267
  %298 = vst [vmem:[%s3 + $0x8] sm:$0xff] %v270
  %299 = vst [vmem:[%s3 + $0x10] sm:$0xff] %v275
  %300 = vst [vmem:[%s3 + $0x18] sm:$0xff] %v278
  %301 = vst [vmem:[%s3 + $0x20] sm:$0xff] %v283
  %302 = vst [vmem:[%s3 + $0x28] sm:$0xff] %v286
  %303 = vst [vmem:[%s3 + $0x30] sm:$0xff] %v291
  %304 = vst [vmem:[%s3 + $0x38] sm:$0xff] %v294
  // Predicated region
  $region14: #{unet_block_outer_forward.12} parent=0 // pred_check
    _
  $region15: #{unet_block_outer_forward.12} parent=0 // pred_check_branch
    %306 = sbr.rel (0) target = $region17
  $region16: #{unet_block_outer_forward.12} parent=0 // pred_region
    _
  $region17: #{unet_block_outer_forward.12} parent=0 // pred_fallthru
    _
  // Predicated region
  $region18: #{unet_block_outer_forward.12} parent=0 // pred_check
    _
  $region19: #{unet_block_outer_forward.12} parent=0 // pred_check_branch
    %308 = sbr.rel (0) target = $region21
  $region20: #{unet_block_outer_forward.12} parent=0 // pred_region
    _
  $region21: #{unet_block_outer_forward.12} parent=0 // pred_fallthru
    _

// kernel: unet_block_outer_forward.13
$region0: #{unet_block_outer_forward.13}
  #allocation0 [shape = 'u32[]', space=smem, size = 0x4, offset = 0x4, fixed_abs, tag = 'smem constant byte address 0x4 - core index']
  #allocation1 [shape = 'u32[144,128]{1,0:T(1,128)}', space=vmem, size = 0x12000, scoped, tag = 'internal scratch']
  %s0 = inlined_call_operand.vmem [shape: bf16[64,216], index: 0, kind: input, shape index: {}]
  %s1 = inlined_call_operand.vmem [shape: bf16[216,1024], index: 1, kind: input, shape index: {}]
  %s2 = inlined_call_operand.vmem [shape: f32[64,1], index: 2, kind: input, shape index: {}]
  %s3 = inlined_call_operand.vmem [shape: f32[64,1024], index: 3, kind: output, shape index: {}]
  %s4 = sld [smem:[#allocation0]]
  $region102: #{unet_block_outer_forward.13} parent=0
    _
  %s6 = ssub.s32 1, %s4
  %s7 = scalar_select 0, %s6, %s4
  $region1: #{unet_block_outer_forward.13} parent=0
    #allocation2 [shape = 'u8[221184]{0}', space=vmem, size = 0x36000, scoped, tag = 'input window, operand 1']
    #allocation3 [shape = 'u8[131072]{0}', space=vmem, size = 0x20000, scoped, tag = 'output window, operand 0']
    loop: start=0, step=1, limit=6
    $region2: #{unet_block_outer_forward.13} parent=1 // loop_pre_header
      _
    $region3: #{unet_block_outer_forward.13} parent=1 // loop_header
      %s9 = sphi 0, %s13
      %p10 = scmp.ge.s32.totalorder %s9, 6
      %s17 = sphi 0, %s17
      %s19 = sphi 0, %s17
      %s20 = sphi 0, %s19
      %s34 = sphi 0, %s20
      %s40 = sphi 0, %s42
      %s43 = sphi 0, %s40
      %s44 = sphi 0, %s43
      %s60 = sphi 0, %s44
      %s64 = sphi 0, %s64
      %s66 = sphi 0, %s64
      %s67 = sphi 0, %s66
      %s81 = sphi 0, %s67
      %s87 = sphi 0, %s89
      %s90 = sphi 0, %s87
      %s91 = sphi 0, %s90
      %s107 = sphi 0, %s91
    $region4: #{unet_block_outer_forward.13} parent=1 // loop_header_branch
      %12 = sbr.rel (%p10) target = $region8
    $region5: #{unet_block_outer_forward.13} parent=1 // loop_body
      %s14 = ssub.s32 %s9, 1
      %s15 = ssub.s32 %s9, 2
      %s16 = sadd.s32 %s9, 1
      %s18 = sadd.s32 %s17, 1
      %p21 = scmp.eq.s32.totalorder %s9, 3
      %p22 = scmp.ne.s32.totalorder %s17, %s19
      %p23 = scmp.eq.s32.totalorder %s9, 0
      %p24 = por %p22, %p23
      %p25 = scmp.ne.s32.totalorder %s17, %s19
      %p26 = scmp.eq.s32.totalorder %s14, 3
      %p27 = por %p25, %p26
      %p28 = scmp.ne.s32.totalorder %s19, %s20
      %p29 = scmp.eq.s32.totalorder %s14, 0
      %p30 = por %p28, %p29
      %p31 = scmp.ne.s32.totalorder %s19, %s20
      %p32 = scmp.eq.s32.totalorder %s15, 3
      %p33 = por %p31, %p32
      %p35 = scmp.ne.s32.totalorder %s20, %s34
      %p36 = scmp.eq.s32.totalorder %s15, 0
      %p37 = por %p35, %p36
      %s38 = ssub.s32 %s9, %s16
      %p39 = scmp.eq.s32.totalorder %s38, 0
      %s41 = sadd.s32 %s40, 1
      %s42 = scalar_select %p39, %s40, %s41
      %p45 = pneg %p39
      %p46 = scmp.eq.s32.totalorder %s9, 3
      %p47 = por %p45, %p46
      %p48 = scmp.ne.s32.totalorder %s40, %s43
      %p49 = scmp.eq.s32.totalorder %s9, 0
      %p50 = por %p48, %p49
      %p51 = scmp.ne.s32.totalorder %s40, %s43
      %p52 = scmp.eq.s32.totalorder %s14, 3
      %p53 = por %p51, %p52
      %p54 = scmp.ne.s32.totalorder %s43, %s44
      %p55 = scmp.eq.s32.totalorder %s14, 0
      %p56 = por %p54, %p55
      %p57 = scmp.ne.s32.totalorder %s43, %s44
      %p58 = scmp.eq.s32.totalorder %s15, 3
      %p59 = por %p57, %p58
      %p61 = scmp.ne.s32.totalorder %s44, %s60
      %p62 = scmp.eq.s32.totalorder %s15, 0
      %p63 = por %p61, %p62
      %s65 = sadd.s32 %s64, 1
      %p68 = scmp.eq.s32.totalorder %s9, 3
      %p69 = scmp.ne.s32.totalorder %s64, %s66
      %p70 = scmp.eq.s32.totalorder %s9, 0
      %p71 = por %p69, %p70
      %p72 = scmp.ne.s32.totalorder %s64, %s66
      %p73 = scmp.eq.s32.totalorder %s14, 3
      %p74 = por %p72, %p73
      %p75 = scmp.ne.s32.totalorder %s66, %s67
      %p76 = scmp.eq.s32.totalorder %s14, 0
      %p77 = por %p75, %p76
      %p78 = scmp.ne.s32.totalorder %s66, %s67
      %p79 = scmp.eq.s32.totalorder %s15, 3
      %p80 = por %p78, %p79
      %p82 = scmp.ne.s32.totalorder %s67, %s81
      %p83 = scmp.eq.s32.totalorder %s15, 0
      %p84 = por %p82, %p83
      %s85 = ssub.s32 %s9, %s16
      %p86 = scmp.eq.s32.totalorder %s85, 0
      %s88 = sadd.s32 %s87, 1
      %s89 = scalar_select %p86, %s87, %s88
      %p92 = pneg %p86
      %p93 = scmp.eq.s32.totalorder %s9, 3
      %p94 = por %p92, %p93
      %p95 = scmp.ne.s32.totalorder %s87, %s90
      %p96 = scmp.eq.s32.totalorder %s9, 0
      %p97 = por %p95, %p96
      %p98 = scmp.ne.s32.totalorder %s87, %s90
      %p99 = scmp.eq.s32.totalorder %s14, 3
      %p100 = por %p98, %p99
      %p101 = scmp.ne.s32.totalorder %s90, %s91
      %p102 = scmp.eq.s32.totalorder %s14, 0
      %p103 = por %p101, %p102
      %p104 = scmp.ne.s32.totalorder %s90, %s91
      %p105 = scmp.eq.s32.totalorder %s15, 3
      %p106 = por %p104, %p105
      %p108 = scmp.ne.s32.totalorder %s91, %s107
      %p109 = scmp.eq.s32.totalorder %s15, 0
      %p110 = por %p108, %p109
      %p111 = scmp.le.s32.totalorder 1, %s9
      %p112 = scmp.lt.s32.totalorder %s9, 5
      %p113 = pnand %p111, %p112
      %p114 = pneg %p113
      // Predicated region
      $region9: #{unet_block_outer_forward.13} parent=5 // pred_check
        _
      $region10: #{unet_block_outer_forward.13} parent=5 // pred_check_branch
        %116 = sbr.rel (%p113) target = $region12
      $region11: #{unet_block_outer_forward.13} parent=5 // pred_region
        %s117 = ssub.s32 %s9, 1
        // Predicated region
        $region13: #{unet_block_outer_forward.13} parent=11 // pred_check
          %p118 = pneg %p30
        $region14: #{unet_block_outer_forward.13} parent=11 // pred_check_branch
          %120 = sbr.rel (%p118) target = $region16
        $region15: #{unet_block_outer_forward.13} parent=11 // pred_region
          _
        $region16: #{unet_block_outer_forward.13} parent=11 // pred_fallthru
          _
        // Predicated region
        $region17: #{unet_block_outer_forward.13} parent=11 // pred_check
          %p121 = pneg %p77
        $region18: #{unet_block_outer_forward.13} parent=11 // pred_check_branch
          %123 = sbr.rel (%p121) target = $region20
        $region19: #{unet_block_outer_forward.13} parent=11 // pred_region
          _
        $region20: #{unet_block_outer_forward.13} parent=11 // pred_fallthru
          _
      $region12: #{unet_block_outer_forward.13} parent=5 // pred_fallthru
        _
      %p124 = scmp.lt.s32.totalorder %s9, 4
      // Predicated region
      $region21: #{unet_block_outer_forward.13} parent=5 // pred_check
        %p125 = pneg %p124
      $region22: #{unet_block_outer_forward.13} parent=5 // pred_check_branch
        %127 = sbr.rel (%p125) target = $region24
      $region23: #{unet_block_outer_forward.13} parent=5 // pred_region
        // Predicated region
        $region25: #{unet_block_outer_forward.13} parent=23 // pred_check
          %p128 = pneg %p50
        $region26: #{unet_block_outer_forward.13} parent=23 // pred_check_branch
          %130 = sbr.rel (%p128) target = $region28
        $region27: #{unet_block_outer_forward.13} parent=23 // pred_region
          %s131 = sand.u32 %s40, 1
          %s132 = sand.u32 %s40, 1
          %s133 = smul.addr %s132, 216
          %s134 = scalar_lea.vmem [#allocation2], %s133
          %s135 = smul.u32 2, %s9
          %s136 = smul.addr %s135, 4
          %s137 = scalar_lea.vmem %s1, %s136
          // Predicated region
          $region29: #{unet_block_outer_forward.13} parent=27 // pred_check
            _
          $region30: #{unet_block_outer_forward.13} parent=27 // pred_check_branch
            %139 = sbr.rel (0) target = $region32
          $region31: #{unet_block_outer_forward.13} parent=27 // pred_region
            // Predicated region
            $region33: #{unet_block_outer_forward.13} parent=31 // pred_check
              _
            $region34: #{unet_block_outer_forward.13} parent=31 // pred_check_branch
              %141 = sbr.rel (0) target = $region36
            $region35: #{unet_block_outer_forward.13} parent=31 // pred_region
              // Predicated region
              $region48: #{unet_block_outer_forward.13} parent=35 // pred_check
                _
              $region49: #{unet_block_outer_forward.13} parent=35 // pred_check_branch
                %209 = sbr.rel (0) target = $region51
              $region50: #{unet_block_outer_forward.13} parent=35 // pred_region
                loop: start=0, step=1, limit=1
                $region52: #{unet_block_outer_forward.13} parent=50 // loop_pre_header
                  _
                $region53: #{unet_block_outer_forward.13} parent=50 // loop_header
                  %s211 = sphi 0, %s215
                  %p212 = scmp.ge.s32.totalorder %s211, 1
                  %s216 = sphi %s137, %s137
                  %s217 = sphi %s134, %s134
                $region54: #{unet_block_outer_forward.13} parent=50 // loop_header_branch
                  %214 = sbr.rel (%p212) target = $region58
                $region55: #{unet_block_outer_forward.13} parent=50 // loop_body
                  %v218 = vld [vmem:[%s216] sm:$0xff]
                  %219 = vst [vmem:[%s217] sm:$0xff] %v218
                  %v220 = vld [vmem:[%s216 + $0x20] sm:$0xff]
                  %221 = vst [vmem:[%s217 + $0x8] sm:$0xff] %v220
                  %v222 = vld [vmem:[%s216 + $0x40] sm:$0xff]
                  %223 = vst [vmem:[%s217 + $0x10] sm:$0xff] %v222
                  %v224 = vld [vmem:[%s216 + $0x60] sm:$0xff]
                  %225 = vst [vmem:[%s217 + $0x18] sm:$0xff] %v224
                  %v226 = vld [vmem:[%s216 + $0x80] sm:$0xff]
                  %227 = vst [vmem:[%s217 + $0x20] sm:$0xff] %v226
                  %v228 = vld [vmem:[%s216 + $0xa0] sm:$0xff]
                  %229 = vst [vmem:[%s217 + $0x28] sm:$0xff] %v228
                  %v230 = vld [vmem:[%s216 + $0xc0] sm:$0xff]
                  %231 = vst [vmem:[%s217 + $0x30] sm:$0xff] %v230
                  %v232 = vld [vmem:[%s216 + $0xe0] sm:$0xff]
                  %233 = vst [vmem:[%s217 + $0x38] sm:$0xff] %v232
                  %v234 = vld [vmem:[%s216 + $0x100] sm:$0xff]
                  %235 = vst [vmem:[%s217 + $0x40] sm:$0xff] %v234
                  %v236 = vld [vmem:[%s216 + $0x120] sm:$0xff]
                  %237 = vst [vmem:[%s217 + $0x48] sm:$0xff] %v236
                  %v238 = vld [vmem:[%s216 + $0x140] sm:$0xff]
                  %239 = vst [vmem:[%s217 + $0x50] sm:$0xff] %v238
                  %v240 = vld [vmem:[%s216 + $0x160] sm:$0xff]
                  %241 = vst [vmem:[%s217 + $0x58] sm:$0xff] %v240
                  %v242 = vld [vmem:[%s216 + $0x180] sm:$0xff]
                  %243 = vst [vmem:[%s217 + $0x60] sm:$0xff] %v242
                  %v244 = vld [vmem:[%s216 + $0x1a0] sm:$0xff]
                  %245 = vst [vmem:[%s217 + $0x68] sm:$0xff] %v244
                  %v246 = vld [vmem:[%s216 + $0x1c0] sm:$0xff]
                  %247 = vst [vmem:[%s217 + $0x70] sm:$0xff] %v246
                  %v248 = vld [vmem:[%s216 + $0x1e0] sm:$0xff]
                  %249 = vst [vmem:[%s217 + $0x78] sm:$0xff] %v248
                  %v250 = vld [vmem:[%s216 + $0x200] sm:$0xff]
                  %251 = vst [vmem:[%s217 + $0x80] sm:$0xff] %v250
                  %v252 = vld [vmem:[%s216 + $0x220] sm:$0xff]
                  %253 = vst [vmem:[%s217 + $0x88] sm:$0xff] %v252
                  %v254 = vld [vmem:[%s216 + $0x240] sm:$0xff]
                  %255 = vst [vmem:[%s217 + $0x90] sm:$0xff] %v254
                  %v256 = vld [vmem:[%s216 + $0x260] sm:$0xff]
                  %257 = vst [vmem:[%s217 + $0x98] sm:$0xff] %v256
                  %v258 = vld [vmem:[%s216 + $0x280] sm:$0xff]
                  %259 = vst [vmem:[%s217 + $0xa0] sm:$0xff] %v258
                  %v260 = vld [vmem:[%s216 + $0x2a0] sm:$0xff]
                  %261 = vst [vmem:[%s217 + $0xa8] sm:$0xff] %v260
                  %v262 = vld [vmem:[%s216 + $0x2c0] sm:$0xff]
                  %263 = vst [vmem:[%s217 + $0xb0] sm:$0xff] %v262
                  %v264 = vld [vmem:[%s216 + $0x2e0] sm:$0xff]
                  %265 = vst [vmem:[%s217 + $0xb8] sm:$0xff] %v264
                  %v266 = vld [vmem:[%s216 + $0x300] sm:$0xff]
                  %267 = vst [vmem:[%s217 + $0xc0] sm:$0xff] %v266
                  %v268 = vld [vmem:[%s216 + $0x320] sm:$0xff]
                  %269 = vst [vmem:[%s217 + $0xc8] sm:$0xff] %v268
                  %v270 = vld [vmem:[%s216 + $0x340] sm:$0xff]
                  %271 = vst [vmem:[%s217 + $0xd0] sm:$0xff] %v270
                $region56: #{unet_block_outer_forward.13} parent=50 // loop_footer
                  %s215 = sadd.s32 1, %s211
                $region57: #{unet_block_outer_forward.13} parent=50 // loop_footer_branch
                  %210 = sbr.rel target = $region53
                $region58: #{unet_block_outer_forward.13} parent=50 // loop_exit
                  _
              $region51: #{unet_block_outer_forward.13} parent=35 // pred_fallthru
                _
              // Predicated region
              $region59: #{unet_block_outer_forward.13} parent=35 // pred_check
                _
              $region60: #{unet_block_outer_forward.13} parent=35 // pred_check_branch
                %273 = sbr.rel target = $region62
              $region61: #{unet_block_outer_forward.13} parent=35 // pred_region
                _
              $region62: #{unet_block_outer_forward.13} parent=35 // pred_fallthru
                _
            $region36: #{unet_block_outer_forward.13} parent=31 // pred_fallthru
              _
            // Predicated region
            $region37: #{unet_block_outer_forward.13} parent=31 // pred_check
              _
            $region38: #{unet_block_outer_forward.13} parent=31 // pred_check_branch
              %143 = sbr.rel target = $region40
            $region39: #{unet_block_outer_forward.13} parent=31 // pred_region
              %s145 = ssub.s32 256, 1
              loop: start=0, step=1, limit=1
              $region41: #{unet_block_outer_forward.13} parent=39 // loop_pre_header
                _
              $region42: #{unet_block_outer_forward.13} parent=39 // loop_header
                %s147 = sphi 0, %s151
                %p148 = scmp.ge.s32.totalorder %s147, 1
                %s152 = sphi %s137, %s137
                %s153 = sphi %s134, %s134
              $region43: #{unet_block_outer_forward.13} parent=39 // loop_header_branch
                %150 = sbr.rel (%p148) target = $region47
              $region44: #{unet_block_outer_forward.13} parent=39 // loop_body
                %v154 = vld [vmem:[%s152] sm:%s145]
                %155 = vst [vmem:[%s153] sm:%s145] %v154
                %v156 = vld [vmem:[%s152 + $0x20] sm:%s145]
                %157 = vst [vmem:[%s153 + $0x8] sm:%s145] %v156
                %v158 = vld [vmem:[%s152 + $0x40] sm:%s145]
                %159 = vst [vmem:[%s153 + $0x10] sm:%s145] %v158
                %v160 = vld [vmem:[%s152 + $0x60] sm:%s145]
                %161 = vst [vmem:[%s153 + $0x18] sm:%s145] %v160
                %v162 = vld [vmem:[%s152 + $0x80] sm:%s145]
                %163 = vst [vmem:[%s153 + $0x20] sm:%s145] %v162
                %v164 = vld [vmem:[%s152 + $0xa0] sm:%s145]
                %165 = vst [vmem:[%s153 + $0x28] sm:%s145] %v164
                %v166 = vld [vmem:[%s152 + $0xc0] sm:%s145]
                %167 = vst [vmem:[%s153 + $0x30] sm:%s145] %v166
                %v168 = vld [vmem:[%s152 + $0xe0] sm:%s145]
                %169 = vst [vmem:[%s153 + $0x38] sm:%s145] %v168
                %v170 = vld [vmem:[%s152 + $0x100] sm:%s145]
                %171 = vst [vmem:[%s153 + $0x40] sm:%s145] %v170
                %v172 = vld [vmem:[%s152 + $0x120] sm:%s145]
                %173 = vst [vmem:[%s153 + $0x48] sm:%s145] %v172
                %v174 = vld [vmem:[%s152 + $0x140] sm:%s145]
                %175 = vst [vmem:[%s153 + $0x50] sm:%s145] %v174
                %v176 = vld [vmem:[%s152 + $0x160] sm:%s145]
                %177 = vst [vmem:[%s153 + $0x58] sm:%s145] %v176
                %v178 = vld [vmem:[%s152 + $0x180] sm:%s145]
                %179 = vst [vmem:[%s153 + $0x60] sm:%s145] %v178
                %v180 = vld [vmem:[%s152 + $0x1a0] sm:%s145]
                %181 = vst [vmem:[%s153 + $0x68] sm:%s145] %v180
                %v182 = vld [vmem:[%s152 + $0x1c0] sm:%s145]
                %183 = vst [vmem:[%s153 + $0x70] sm:%s145] %v182
                %v184 = vld [vmem:[%s152 + $0x1e0] sm:%s145]
                %185 = vst [vmem:[%s153 + $0x78] sm:%s145] %v184
                %v186 = vld [vmem:[%s152 + $0x200] sm:%s145]
                %187 = vst [vmem:[%s153 + $0x80] sm:%s145] %v186
                %v188 = vld [vmem:[%s152 + $0x220] sm:%s145]
                %189 = vst [vmem:[%s153 + $0x88] sm:%s145] %v188
                %v190 = vld [vmem:[%s152 + $0x240] sm:%s145]
                %191 = vst [vmem:[%s153 + $0x90] sm:%s145] %v190
                %v192 = vld [vmem:[%s152 + $0x260] sm:%s145]
                %193 = vst [vmem:[%s153 + $0x98] sm:%s145] %v192
                %v194 = vld [vmem:[%s152 + $0x280] sm:%s145]
                %195 = vst [vmem:[%s153 + $0xa0] sm:%s145] %v194
                %v196 = vld [vmem:[%s152 + $0x2a0] sm:%s145]
                %197 = vst [vmem:[%s153 + $0xa8] sm:%s145] %v196
                %v198 = vld [vmem:[%s152 + $0x2c0] sm:%s145]
                %199 = vst [vmem:[%s153 + $0xb0] sm:%s145] %v198
                %v200 = vld [vmem:[%s152 + $0x2e0] sm:%s145]
                %201 = vst [vmem:[%s153 + $0xb8] sm:%s145] %v200
                %v202 = vld [vmem:[%s152 + $0x300] sm:%s145]
                %203 = vst [vmem:[%s153 + $0xc0] sm:%s145] %v202
                %v204 = vld [vmem:[%s152 + $0x320] sm:%s145]
                %205 = vst [vmem:[%s153 + $0xc8] sm:%s145] %v204
                %v206 = vld [vmem:[%s152 + $0x340] sm:%s145]
                %207 = vst [vmem:[%s153 + $0xd0] sm:%s145] %v206
              $region45: #{unet_block_outer_forward.13} parent=39 // loop_footer
                %s151 = sadd.s32 1, %s147
              $region46: #{unet_block_outer_forward.13} parent=39 // loop_footer_branch
                %146 = sbr.rel target = $region42
              $region47: #{unet_block_outer_forward.13} parent=39 // loop_exit
                _
            $region40: #{unet_block_outer_forward.13} parent=31 // pred_fallthru
              _
          $region32: #{unet_block_outer_forward.13} parent=27 // pred_fallthru
            _
          %274 = vnop
        $region28: #{unet_block_outer_forward.13} parent=23 // pred_fallthru
          _
      $region24: #{unet_block_outer_forward.13} parent=5 // pred_fallthru
        _
      %p275 = scmp.le.s32.totalorder 1, %s9
      %p276 = scmp.lt.s32.totalorder %s9, 5
      %p277 = pnand %p275, %p276
      %p278 = pneg %p277
      // Predicated region
      $region63: #{unet_block_outer_forward.13} parent=5 // pred_check
        _
      $region64: #{unet_block_outer_forward.13} parent=5 // pred_check_branch
        %280 = sbr.rel (%p277) target = $region66
      $region65: #{unet_block_outer_forward.13} parent=5 // pred_region
        %s281 = ssub.s32 %s9, 1
        %s282 = sand.u32 %s43, 1
        %s283 = sand.u32 %s43, 1
        %s284 = smul.addr %s283, 216
        %s285 = scalar_lea.vmem [#allocation2], %s284
        // Predicated region
        $region67: #{unet_block_outer_forward.13} parent=65 // pred_check
          %p286 = pneg %p56
        $region68: #{unet_block_outer_forward.13} parent=65 // pred_check_branch
          %288 = sbr.rel (%p286) target = $region70
        $region69: #{unet_block_outer_forward.13} parent=65 // pred_region
          _
        $region70: #{unet_block_outer_forward.13} parent=65 // pred_fallthru
          _
        %p289 = pneg %p30
        %p290 = pneg %p27
        %s291 = sand.u32 %s43, 1
        %s292 = sand.u32 %s43, 1
        %s293 = smul.addr %s292, 216
        %s294 = scalar_lea.vmem [#allocation2], %s293
        %p295 = pneg %p56
        %p296 = pneg %p53
        %p297 = pneg %p77
        %p298 = pneg %p74
        %p299 = pneg %p103
        %p300 = pneg %p100
        %s301 = sand.u32 %s90, 1
        %s302 = sand.u32 %s90, 1
        %s303 = smul.addr %s302, 128
        %s304 = scalar_lea.vmem [#allocation3], %s303
        %s305 = smul.u32 2, %s14
        %s306 = smul.u32 2, %s14
        %v308 = vld [vmem:[%s0] sm:$0xff]
        %v309 = vld [vmem:[%s0 + $0x8] sm:$0xff]
        %v310 = vld [vmem:[%s0 + $0x10] sm:$0xff]
        %v311 = vld [vmem:[%s0 + $0x18] sm:$0xff]
        %v312 = vld [vmem:[%s0 + $0x20] sm:$0xff]
        %v313 = vld [vmem:[%s0 + $0x28] sm:$0xff]
        %v314 = vld [vmem:[%s0 + $0x30] sm:$0xff]
        %v315 = vld [vmem:[%s0 + $0x38] sm:$0xff]
        %v316 = vld [vmem:[%s285] sm:$0xff]
        %v317 = vld [vmem:[%s285 + $0x8] sm:$0xff]
        %v318 = vld [vmem:[%s285 + $0x10] sm:$0xff]
        %v319 = vld [vmem:[%s285 + $0x18] sm:$0xff]
        %v320 = vld [vmem:[%s285 + $0x20] sm:$0xff]
        %v321 = vld [vmem:[%s285 + $0x28] sm:$0xff]
        %v322 = vld [vmem:[%s285 + $0x30] sm:$0xff]
        %v323 = vld [vmem:[%s285 + $0x38] sm:$0xff]
        %v324 = vld [vmem:[%s285 + $0x40] sm:$0xff]
        %v325 = vld [vmem:[%s285 + $0x48] sm:$0xff]
        %v326 = vld [vmem:[%s285 + $0x50] sm:$0xff]
        %v327 = vld [vmem:[%s285 + $0x58] sm:$0xff]
        %v328 = vld [vmem:[%s285 + $0x60] sm:$0xff]
        %v329 = vld [vmem:[%s285 + $0x68] sm:$0xff]
        %v330 = vld [vmem:[%s285 + $0x70] sm:$0xff]
        %v331 = vld [vmem:[%s285 + $0x78] sm:$0xff]
        %v332 = vld [vmem:[%s285 + $0x80] sm:$0xff]
        %v333 = vld [vmem:[%s285 + $0x88] sm:$0xff]
        %v334 = vld [vmem:[%s285 + $0x90] sm:$0xff]
        %v335 = vld [vmem:[%s285 + $0x98] sm:$0xff]
        %v336 = vld [vmem:[%s285 + $0xa0] sm:$0xff]
        %v337 = vld [vmem:[%s285 + $0xa8] sm:$0xff]
        %v338 = vld [vmem:[%s285 + $0xb0] sm:$0xff]
        %v339 = vld [vmem:[%s285 + $0xb8] sm:$0xff]
        %v340 = vld [vmem:[%s285 + $0xc0] sm:$0xff]
        %v341 = vld [vmem:[%s285 + $0xc8] sm:$0xff]
        %v342 = vld [vmem:[%s285 + $0xd0] sm:$0xff]
        %v343 = vld [vmem:[%s2] sm:$0xff]
        %v344 = vld [vmem:[%s2 + $0x8] sm:$0xff]
        %v345 = vld [vmem:[%s2 + $0x10] sm:$0xff]
        %v346 = vld [vmem:[%s2 + $0x18] sm:$0xff]
        %v347 = vld [vmem:[%s2 + $0x20] sm:$0xff]
        %v348 = vld [vmem:[%s2 + $0x28] sm:$0xff]
        %v349 = vld [vmem:[%s2 + $0x30] sm:$0xff]
        %v350 = vld [vmem:[%s2 + $0x38] sm:$0xff]
        %352 = vset.pattern.permute.xlu0 0
        %353 = vperm.xlu0 %352, %v343
        %v354 = vpop.permute.xlu0 %353
        %357 = vset.pattern.permute.xlu0 0
        %358 = vperm.xlu0 %357, %v344
        %v359 = vpop.permute.xlu0 %358
        %362 = vset.pattern.permute.xlu0 0
        %363 = vperm.xlu0 %362, %v345
        %v364 = vpop.permute.xlu0 %363
        %367 = vset.pattern.permute.xlu0 0
        %368 = vperm.xlu0 %367, %v346
        %v369 = vpop.permute.xlu0 %368
        %372 = vset.pattern.permute.xlu0 0
        %373 = vperm.xlu0 %372, %v347
        %v374 = vpop.permute.xlu0 %373
        %377 = vset.pattern.permute.xlu0 0
        %378 = vperm.xlu0 %377, %v348
        %v379 = vpop.permute.xlu0 %378
        %382 = vset.pattern.permute.xlu0 0
        %383 = vperm.xlu0 %382, %v349
        %v384 = vpop.permute.xlu0 %383
        %387 = vset.pattern.permute.xlu0 0
        %388 = vperm.xlu0 %387, %v350
        %v389 = vpop.permute.xlu0 %388
        %v399 = vunpack.c.l.b16 %v308
        %v400 = vunpack.c.h.b16 %v308
        %v401 = vunpack.c.l.b16 %v309
        %v402 = vunpack.c.h.b16 %v309
        %v403 = vunpack.c.l.b16 %v310
        %v404 = vunpack.c.h.b16 %v310
        %v405 = vunpack.c.l.b16 %v311
        %v406 = vunpack.c.h.b16 %v311
        %v407 = vunpack.c.l.b16 %v312
        %v408 = vunpack.c.h.b16 %v312
        %v409 = vunpack.c.l.b16 %v313
        %v410 = vunpack.c.h.b16 %v313
        %v411 = vunpack.c.l.b16 %v314
        %v412 = vunpack.c.h.b16 %v314
        %v413 = vunpack.c.l.b16 %v315
        %v414 = vunpack.c.h.b16 %v315
        %v415 = vpack.c.b16 %v401, %v399
        %v416 = vpack.c.b16 %v402, %v400
        %v417 = vpack.c.b16 %v405, %v403
        %v418 = vpack.c.b16 %v406, %v404
        %v419 = vpack.c.b16 %v409, %v407
        %v420 = vpack.c.b16 %v410, %v408
        %v421 = vpack.c.b16 %v413, %v411
        %v422 = vpack.c.b16 %v414, %v412
        %v454 = vunpack.c.l.b16 %v316
        %v455 = vunpack.c.h.b16 %v316
        %v456 = vunpack.c.l.b16 %v317
        %v457 = vunpack.c.h.b16 %v317
        %v458 = vunpack.c.l.b16 %v318
        %v459 = vunpack.c.h.b16 %v318
        %v460 = vunpack.c.l.b16 %v319
        %v461 = vunpack.c.h.b16 %v319
        %v462 = vunpack.c.l.b16 %v320
        %v463 = vunpack.c.h.b16 %v320
        %v464 = vunpack.c.l.b16 %v321
        %v465 = vunpack.c.h.b16 %v321
        %v466 = vunpack.c.l.b16 %v322
        %v467 = vunpack.c.h.b16 %v322
        %v468 = vunpack.c.l.b16 %v323
        %v469 = vunpack.c.h.b16 %v323
        %v470 = vunpack.c.l.b16 %v324
        %v471 = vunpack.c.h.b16 %v324
        %v472 = vunpack.c.l.b16 %v325
        %v473 = vunpack.c.h.b16 %v325
        %v474 = vunpack.c.l.b16 %v326
        %v475 = vunpack.c.h.b16 %v326
        %v476 = vunpack.c.l.b16 %v327
        %v477 = vunpack.c.h.b16 %v327
        %v478 = vunpack.c.l.b16 %v328
        %v479 = vunpack.c.h.b16 %v328
        %v480 = vunpack.c.l.b16 %v329
        %v481 = vunpack.c.h.b16 %v329
        %v482 = vunpack.c.l.b16 %v330
        %v483 = vunpack.c.h.b16 %v330
        %v484 = vunpack.c.l.b16 %v331
        %v485 = vunpack.c.h.b16 %v331
        %v486 = vunpack.c.l.b16 %v332
        %v487 = vunpack.c.h.b16 %v332
        %v488 = vunpack.c.l.b16 %v333
        %v489 = vunpack.c.h.b16 %v333
        %v490 = vunpack.c.l.b16 %v334
        %v491 = vunpack.c.h.b16 %v334
        %v492 = vunpack.c.l.b16 %v335
        %v493 = vunpack.c.h.b16 %v335
        %v494 = vunpack.c.l.b16 %v336
        %v495 = vunpack.c.h.b16 %v336
        %v496 = vunpack.c.l.b16 %v337
        %v497 = vunpack.c.h.b16 %v337
        %v498 = vunpack.c.l.b16 %v338
        %v499 = vunpack.c.h.b16 %v338
        %v500 = vunpack.c.l.b16 %v339
        %v501 = vunpack.c.h.b16 %v339
        %v502 = vunpack.c.l.b16 %v340
        %v503 = vunpack.c.h.b16 %v340
        %v504 = vunpack.c.l.b16 %v341
        %v505 = vunpack.c.h.b16 %v341
        %v506 = vunpack.c.l.b16 %v342
        %v507 = vunpack.c.h.b16 %v342
        %v508 = vpack.c.b16 %v456, %v454
        %v509 = vpack.c.b16 %v457, %v455
        %v510 = vpack.c.b16 %v460, %v458
        %v511 = vpack.c.b16 %v461, %v459
        %v512 = vpack.c.b16 %v464, %v462
        %v513 = vpack.c.b16 %v465, %v463
        %v514 = vpack.c.b16 %v468, %v466
        %v515 = vpack.c.b16 %v469, %v467
        %v516 = vpack.c.b16 %v472, %v470
        %v517 = vpack.c.b16 %v473, %v471
        %v518 = vpack.c.b16 %v476, %v474
        %v519 = vpack.c.b16 %v477, %v475
        %v520 = vpack.c.b16 %v480, %v478
        %v521 = vpack.c.b16 %v481, %v479
        %v522 = vpack.c.b16 %v484, %v482
        %v523 = vpack.c.b16 %v485, %v483
        %v524 = vpack.c.b16 %v488, %v486
        %v525 = vpack.c.b16 %v489, %v487
        %v526 = vpack.c.b16 %v492, %v490
        %v527 = vpack.c.b16 %v493, %v491
        %v528 = vpack.c.b16 %v496, %v494
        %v529 = vpack.c.b16 %v497, %v495
        %v530 = vpack.c.b16 %v500, %v498
        %v531 = vpack.c.b16 %v501, %v499
        %v532 = vpack.c.b16 %v504, %v502
        %v533 = vpack.c.b16 %v505, %v503
        %v534 = vpack.c.b16 %v506, %v506
        %v535 = vpack.c.b16 %v507, %v507
        %vm562 = vcmask 719872
        %v564 = vsel %vm562, %v416, 0
        %v567 = vsel %vm562, %v418, 0
        %v570 = vsel %vm562, %v420, 0
        %v573 = vsel %vm562, %v422, 0
        %vm575 = vcmask 1043456
        %v577 = vsel %vm575, %v534, 0
        %v580 = vsel %vm575, %v535, 0
        %582 = vmatprep.subr.bf16.mxu0 %v523
        %583 = vmatpush1.bf16.msra.mxu0 %v522
        %584 = vmatprep.subr.bf16.mxu0 %v521
        %585 = vmatpush1.bf16.msra.mxu0 %v520
        %586 = vmatprep.subr.bf16.mxu0 %v519
        %587 = vmatpush1.bf16.msra.mxu0 %v518
        %588 = vmatprep.subr.bf16.mxu0 %v517
        %589 = vmatpush1.bf16.msra.mxu0 %v516
        %590 = vmatprep.subr.bf16.mxu0 %v515
        %591 = vmatpush1.bf16.msra.mxu0 %v514
        %592 = vmatprep.subr.bf16.mxu0 %v513
        %593 = vmatpush1.bf16.msra.mxu0 %v512
        %594 = vmatprep.subr.bf16.mxu0 %v511
        %595 = vmatpush1.bf16.msra.mxu0 %v510
        %596 = vmatprep.subr.bf16.mxu0 %v509
        %597 = vmatpush1.bf16.msra.mxu0 %v508
        %598 = vmatprep.subr.bf16.mxu0 0
        %599 = vmatpush2.bf16.msra.mxu0 0
        %600 = vmatprep.subr.bf16.mxu0 0
        %601 = vmatpush2.bf16.msra.mxu0 0
        %602 = vmatprep.subr.bf16.mxu0 %v580
        %603 = vmatpush2.bf16.msra.mxu0 %v577
        %604 = vmatprep.subr.bf16.mxu0 %v533
        %605 = vmatpush2.bf16.msra.mxu0 %v532
        %606 = vmatprep.subr.bf16.mxu0 %v531
        %607 = vmatpush2.bf16.msra.mxu0 %v530
        %608 = vmatprep.subr.bf16.mxu0 %v529
        %609 = vmatpush2.bf16.msra.mxu0 %v528
        %610 = vmatprep.subr.bf16.mxu0 %v527
        %611 = vmatpush2.bf16.msra.mxu0 %v526
        %612 = vmatprep.subr.bf16.mxu0 %v525
        %613 = vmatpush2.bf16.msra.mxu0 %v524
        %614 = vmatprep.mubr.bf16.mxu0 %v564
        %615 = vmatmul.mubr.bf16.gmra.mxu0 %v415
        %v616 = vpop.f32.mrf.mxu0
        %v617 = vadd.f32 %v354, %v616
        %v618 = vpop.f32.mrf.mxu0
        %v619 = vadd.f32 %v354, %v618
        %v620 = vpop.f32.mrf.mxu0
        %v621 = vadd.f32 %v359, %v620
        %v622 = vpop.f32.mrf.mxu0
        %v623 = vadd.f32 %v359, %v622
        %624 = vmatprep.mubr.bf16.mxu0 %v567
        %625 = vmatmul.mubr.bf16.gmra.mxu0 %v417
        %v626 = vpop.f32.mrf.mxu0
        %v627 = vadd.f32 %v364, %v626
        %v628 = vpop.f32.mrf.mxu0
        %v629 = vadd.f32 %v364, %v628
        %v630 = vpop.f32.mrf.mxu0
        %v631 = vadd.f32 %v369, %v630
        %v632 = vpop.f32.mrf.mxu0
        %v633 = vadd.f32 %v369, %v632
        %634 = vmatprep.mubr.bf16.mxu0 %v570
        %635 = vmatmul.mubr.bf16.gmra.mxu0 %v419
        %v636 = vpop.f32.mrf.mxu0
        %v637 = vadd.f32 %v374, %v636
        %v638 = vpop.f32.mrf.mxu0
        %v639 = vadd.f32 %v374, %v638
        %v640 = vpop.f32.mrf.mxu0
        %v641 = vadd.f32 %v379, %v640
        %v642 = vpop.f32.mrf.mxu0
        %v643 = vadd.f32 %v379, %v642
        %644 = vmatprep.mubr.bf16.mxu0 %v573
        %645 = vmatmul.mubr.bf16.gmra.mxu0 %v421
        %v646 = vpop.f32.mrf.mxu0
        %v647 = vadd.f32 %v384, %v646
        %v648 = vpop.f32.mrf.mxu0
        %v649 = vadd.f32 %v384, %v648
        %v650 = vpop.f32.mrf.mxu0
        %v651 = vadd.f32 %v389, %v650
        %v652 = vpop.f32.mrf.mxu0
        %v653 = vadd.f32 %v389, %v652
        %654 = vdwg.mxu0
        %655 = vst [vmem:[%s304] sm:$0xff] %v617
        %656 = vst [vmem:[%s304 + $0x8] sm:$0xff] %v619
        %657 = vst [vmem:[%s304 + $0x10] sm:$0xff] %v621
        %658 = vst [vmem:[%s304 + $0x18] sm:$0xff] %v623
        %659 = vst [vmem:[%s304 + $0x20] sm:$0xff] %v627
        %660 = vst [vmem:[%s304 + $0x28] sm:$0xff] %v629
        %661 = vst [vmem:[%s304 + $0x30] sm:$0xff] %v631
        %662 = vst [vmem:[%s304 + $0x38] sm:$0xff] %v633
        %663 = vst [vmem:[%s304 + $0x40] sm:$0xff] %v637
        %664 = vst [vmem:[%s304 + $0x48] sm:$0xff] %v639
        %665 = vst [vmem:[%s304 + $0x50] sm:$0xff] %v641
        %666 = vst [vmem:[%s304 + $0x58] sm:$0xff] %v643
        %667 = vst [vmem:[%s304 + $0x60] sm:$0xff] %v647
        %668 = vst [vmem:[%s304 + $0x68] sm:$0xff] %v649
        %669 = vst [vmem:[%s304 + $0x70] sm:$0xff] %v651
        %670 = vst [vmem:[%s304 + $0x78] sm:$0xff] %v653
        %s671 = sand.u32 %s90, 1
        %s672 = sand.u32 %s90, 1
        %s673 = smul.addr %s672, 128
        %s674 = scalar_lea.vmem [#allocation3], %s673
        // Predicated region
        $region71: #{unet_block_outer_forward.13} parent=65 // pred_check
          %p675 = pneg %p100
        $region72: #{unet_block_outer_forward.13} parent=65 // pred_check_branch
          %677 = sbr.rel (%p675) target = $region74
        $region73: #{unet_block_outer_forward.13} parent=65 // pred_region
          %s678 = smul.u32 2, %s14
          %s679 = smul.addr %s678, 8
          %s680 = scalar_lea.vmem %s3, %s679
          // Predicated region
          $region75: #{unet_block_outer_forward.13} parent=73 // pred_check
            _
          $region76: #{unet_block_outer_forward.13} parent=73 // pred_check_branch
            %682 = sbr.rel (0) target = $region78
          $region77: #{unet_block_outer_forward.13} parent=73 // pred_region
            // Predicated region
            $region79: #{unet_block_outer_forward.13} parent=77 // pred_check
              _
            $region80: #{unet_block_outer_forward.13} parent=77 // pred_check_branch
              %684 = sbr.rel (0) target = $region82
            $region81: #{unet_block_outer_forward.13} parent=77 // pred_region
              loop: start=0, step=1, limit=1
              $region83: #{unet_block_outer_forward.13} parent=81 // loop_pre_header
                _
              $region84: #{unet_block_outer_forward.13} parent=81 // loop_header
                %s686 = sphi 0, %s690
                %p687 = scmp.ge.s32.totalorder %s686, 1
                %s691 = sphi %s674, %s674
                %s692 = sphi %s680, %s680
              $region85: #{unet_block_outer_forward.13} parent=81 // loop_header_branch
                %689 = sbr.rel (%p687) target = $region89
              $region86: #{unet_block_outer_forward.13} parent=81 // loop_body
                %v693 = vld [vmem:[%s691] sm:$0xff]
                %694 = vst [vmem:[%s692] sm:$0xff] %v693
                %v695 = vld [vmem:[%s691 + $0x8] sm:$0xff]
                %696 = vst [vmem:[%s692 + $0x8] sm:$0xff] %v695
                %v697 = vld [vmem:[%s691 + $0x10] sm:$0xff]
                %698 = vst [vmem:[%s692 + $0x40] sm:$0xff] %v697
                %v699 = vld [vmem:[%s691 + $0x18] sm:$0xff]
                %700 = vst [vmem:[%s692 + $0x48] sm:$0xff] %v699
                %v701 = vld [vmem:[%s691 + $0x20] sm:$0xff]
                %702 = vst [vmem:[%s692 + $0x80] sm:$0xff] %v701
                %v703 = vld [vmem:[%s691 + $0x28] sm:$0xff]
                %704 = vst [vmem:[%s692 + $0x88] sm:$0xff] %v703
                %v705 = vld [vmem:[%s691 + $0x30] sm:$0xff]
                %706 = vst [vmem:[%s692 + $0xc0] sm:$0xff] %v705
                %v707 = vld [vmem:[%s691 + $0x38] sm:$0xff]
                %708 = vst [vmem:[%s692 + $0xc8] sm:$0xff] %v707
                %v709 = vld [vmem:[%s691 + $0x40] sm:$0xff]
                %710 = vst [vmem:[%s692 + $0x100] sm:$0xff] %v709
                %v711 = vld [vmem:[%s691 + $0x48] sm:$0xff]
                %712 = vst [vmem:[%s692 + $0x108] sm:$0xff] %v711
                %v713 = vld [vmem:[%s691 + $0x50] sm:$0xff]
                %714 = vst [vmem:[%s692 + $0x140] sm:$0xff] %v713
                %v715 = vld [vmem:[%s691 + $0x58] sm:$0xff]
                %716 = vst [vmem:[%s692 + $0x148] sm:$0xff] %v715
                %v717 = vld [vmem:[%s691 + $0x60] sm:$0xff]
                %718 = vst [vmem:[%s692 + $0x180] sm:$0xff] %v717
                %v719 = vld [vmem:[%s691 + $0x68] sm:$0xff]
                %720 = vst [vmem:[%s692 + $0x188] sm:$0xff] %v719
                %v721 = vld [vmem:[%s691 + $0x70] sm:$0xff]
                %722 = vst [vmem:[%s692 + $0x1c0] sm:$0xff] %v721
                %v723 = vld [vmem:[%s691 + $0x78] sm:$0xff]
                %724 = vst [vmem:[%s692 + $0x1c8] sm:$0xff] %v723
              $region87: #{unet_block_outer_forward.13} parent=81 // loop_footer
                %s690 = sadd.s32 1, %s686
              $region88: #{unet_block_outer_forward.13} parent=81 // loop_footer_branch
                %685 = sbr.rel target = $region84
              $region89: #{unet_block_outer_forward.13} parent=81 // loop_exit
                _
            $region82: #{unet_block_outer_forward.13} parent=77 // pred_fallthru
              _
            // Predicated region
            $region90: #{unet_block_outer_forward.13} parent=77 // pred_check
              _
            $region91: #{unet_block_outer_forward.13} parent=77 // pred_check_branch
              %726 = sbr.rel target = $region93
            $region92: #{unet_block_outer_forward.13} parent=77 // pred_region
              _
            $region93: #{unet_block_outer_forward.13} parent=77 // pred_fallthru
              _
          $region78: #{unet_block_outer_forward.13} parent=73 // pred_fallthru
            _
          %727 = vnop
        $region74: #{unet_block_outer_forward.13} parent=65 // pred_fallthru
          _
      $region66: #{unet_block_outer_forward.13} parent=5 // pred_fallthru
        _
      %p728 = scmp.le.s32.totalorder 2, %s9
      // Predicated region
      $region94: #{unet_block_outer_forward.13} parent=5 // pred_check
        %p729 = pneg %p728
      $region95: #{unet_block_outer_forward.13} parent=5 // pred_check_branch
        %731 = sbr.rel (%p729) target = $region97
      $region96: #{unet_block_outer_forward.13} parent=5 // pred_region
        %s732 = ssub.s32 %s9, 2
        // Predicated region
        $region98: #{unet_block_outer_forward.13} parent=96 // pred_check
          %p733 = pneg %p106
        $region99: #{unet_block_outer_forward.13} parent=96 // pred_check_branch
          %735 = sbr.rel (%p733) target = $region101
        $region100: #{unet_block_outer_forward.13} parent=96 // pred_region
          %s736 = sand.u32 %s91, 1
          %s737 = sand.u32 %s91, 1
          %s738 = smul.addr %s737, 128
          %s739 = scalar_lea.vmem [#allocation3], %s738
        $region101: #{unet_block_outer_forward.13} parent=96 // pred_fallthru
          _
      $region97: #{unet_block_outer_forward.13} parent=5 // pred_fallthru
        _
    $region6: #{unet_block_outer_forward.13} parent=1 // loop_footer
      %s13 = sadd.s32 1, %s9
    $region7: #{unet_block_outer_forward.13} parent=1 // loop_footer_branch
      %8 = sbr.rel target = $region3
    $region8: #{unet_block_outer_forward.13} parent=1 // loop_exit
      _

// kernel: unet_block_outer_forward.14
$region0: #{unet_block_outer_forward.14}
  #allocation0 [shape = 'u32[]', space=smem, size = 0x4, offset = 0x4, fixed_abs, tag = 'smem constant byte address 0x4 - core index']
  #allocation1 [shape = 'u32[144,128]{1,0:T(1,128)}', space=vmem, size = 0x12000, scoped, tag = 'internal scratch']
  %s0 = inlined_call_operand.vmem [shape: f32[16,4096], index: 0, kind: input, shape index: {}]
  %s1 = inlined_call_operand.vmem [shape: f32[16,4096], index: 1, kind: output, shape index: {}]
  %s2 = sld [smem:[#allocation0]]
  $region37: #{unet_block_outer_forward.14} parent=0
    _
  %s4 = ssub.s32 1, %s2
  %s5 = scalar_select 0, %s4, %s2
  loop: start=0, step=1, limit=4
  $region2: #{unet_block_outer_forward.14} parent=0 // loop_pre_header
    _
  $region3: #{unet_block_outer_forward.14} parent=0 // loop_header
    %s7 = sphi 0, %s11
    %p8 = scmp.ge.s32.totalorder %s7, 4
    %s17 = sphi 0, %s19
    %s20 = sphi 0, %s17
    %s21 = sphi 0, %s20
    %s37 = sphi 0, %s21
    %s43 = sphi 0, %s45
    %s46 = sphi 0, %s43
    %s47 = sphi 0, %s46
    %s63 = sphi 0, %s47
  $region4: #{unet_block_outer_forward.14} parent=0 // loop_header_branch
    %10 = sbr.rel (%p8) target = $region8
  $region5: #{unet_block_outer_forward.14} parent=0 // loop_body
    %s12 = ssub.s32 %s7, 1
    %s13 = ssub.s32 %s7, 2
    %s14 = sadd.s32 %s7, 1
    %s15 = ssub.s32 %s7, %s14
    %p16 = scmp.eq.s32.totalorder %s15, 0
    %s18 = sadd.s32 %s17, 1
    %s19 = scalar_select %p16, %s17, %s18
    %p22 = pneg %p16
    %p23 = scmp.eq.s32.totalorder %s7, 1
    %p24 = por %p22, %p23
    %p25 = scmp.ne.s32.totalorder %s17, %s20
    %p26 = scmp.eq.s32.totalorder %s7, 0
    %p27 = por %p25, %p26
    %p28 = scmp.ne.s32.totalorder %s17, %s20
    %p29 = scmp.eq.s32.totalorder %s12, 1
    %p30 = por %p28, %p29
    %p31 = scmp.ne.s32.totalorder %s20, %s21
    %p32 = scmp.eq.s32.totalorder %s12, 0
    %p33 = por %p31, %p32
    %p34 = scmp.ne.s32.totalorder %s20, %s21
    %p35 = scmp.eq.s32.totalorder %s13, 1
    %p36 = por %p34, %p35
    %p38 = scmp.ne.s32.totalorder %s21, %s37
    %p39 = scmp.eq.s32.totalorder %s13, 0
    %p40 = por %p38, %p39
    %s41 = ssub.s32 %s7, %s14
    %p42 = scmp.eq.s32.totalorder %s41, 0
    %s44 = sadd.s32 %s43, 1
    %s45 = scalar_select %p42, %s43, %s44
    %p48 = pneg %p42
    %p49 = scmp.eq.s32.totalorder %s7, 1
    %p50 = por %p48, %p49
    %p51 = scmp.ne.s32.totalorder %s43, %s46
    %p52 = scmp.eq.s32.totalorder %s7, 0
    %p53 = por %p51, %p52
    %p54 = scmp.ne.s32.totalorder %s43, %s46
    %p55 = scmp.eq.s32.totalorder %s12, 1
    %p56 = por %p54, %p55
    %p57 = scmp.ne.s32.totalorder %s46, %s47
    %p58 = scmp.eq.s32.totalorder %s12, 0
    %p59 = por %p57, %p58
    %p60 = scmp.ne.s32.totalorder %s46, %s47
    %p61 = scmp.eq.s32.totalorder %s13, 1
    %p62 = por %p60, %p61
    %p64 = scmp.ne.s32.totalorder %s47, %s63
    %p65 = scmp.eq.s32.totalorder %s13, 0
    %p66 = por %p64, %p65
    %p67 = scmp.le.s32.totalorder 1, %s7
    %p68 = scmp.lt.s32.totalorder %s7, 3
    %p69 = pnand %p67, %p68
    %p70 = pneg %p69
    // Predicated region
    $region9: #{unet_block_outer_forward.14} parent=5 // pred_check
      _
    $region10: #{unet_block_outer_forward.14} parent=5 // pred_check_branch
      %72 = sbr.rel (%p69) target = $region12
    $region11: #{unet_block_outer_forward.14} parent=5 // pred_region
      %s73 = ssub.s32 %s7, 1
    $region12: #{unet_block_outer_forward.14} parent=5 // pred_fallthru
      _
    %p74 = scmp.lt.s32.totalorder %s7, 2
    // Predicated region
    $region13: #{unet_block_outer_forward.14} parent=5 // pred_check
      %p75 = pneg %p74
    $region14: #{unet_block_outer_forward.14} parent=5 // pred_check_branch
      %77 = sbr.rel (%p75) target = $region16
    $region15: #{unet_block_outer_forward.14} parent=5 // pred_region
      // Predicated region
      $region17: #{unet_block_outer_forward.14} parent=15 // pred_check
        %p78 = pneg %p27
      $region18: #{unet_block_outer_forward.14} parent=15 // pred_check_branch
        %80 = sbr.rel (%p78) target = $region20
      $region19: #{unet_block_outer_forward.14} parent=15 // pred_region
        %p81 = scmp.lt.s32.totalorder %s7, 1
        %s82 = scalar_select %p81, %s7, 1
        %s83 = smul.addr %s82, 32
        %s84 = smul.addr %s83, 8
        %s85 = scalar_lea.vmem %s0, %s84
      $region20: #{unet_block_outer_forward.14} parent=15 // pred_fallthru
        _
    $region16: #{unet_block_outer_forward.14} parent=5 // pred_fallthru
      _
    %p86 = scmp.le.s32.totalorder 1, %s7
    %p87 = scmp.lt.s32.totalorder %s7, 3
    %p88 = pnand %p86, %p87
    %p89 = pneg %p88
    // Predicated region
    $region21: #{unet_block_outer_forward.14} parent=5 // pred_check
      _
    $region22: #{unet_block_outer_forward.14} parent=5 // pred_check_branch
      %91 = sbr.rel (%p88) target = $region24
    $region23: #{unet_block_outer_forward.14} parent=5 // pred_region
      %s92 = ssub.s32 %s7, 1
      %p93 = scmp.lt.s32.totalorder %s12, 1
      %s94 = scalar_select %p93, %s12, 1
      %s95 = smul.addr %s94, 32
      %s96 = smul.addr %s95, 8
      %s97 = scalar_lea.vmem %s0, %s96
      %p98 = pneg %p33
      %p99 = pneg %p30
      %p100 = pneg %p59
      %p101 = pneg %p56
      %p102 = scmp.lt.s32.totalorder %s12, 1
      %s103 = scalar_select %p102, %s12, 1
      %s104 = smul.addr %s103, 32
      %s105 = smul.addr %s104, 8
      %s106 = scalar_lea.vmem %s1, %s105
      %p107 = scmp.lt.s32.totalorder %s12, 1
      %s108 = scalar_select %p107, %s12, 1
      %s109 = smul.addr %s108, 32
      %s110 = smul.addr %s109, 8
      %s111 = scalar_lea.vmem %s0, %s110
      %p112 = scmp.lt.s32.totalorder %s12, 1
      %s113 = scalar_select %p112, %s12, 1
      %s114 = smul.addr %s113, 32
      %s115 = smul.addr %s114, 8
      %s116 = scalar_lea.vmem %s1, %s115
      %v117 = vld [vmem:[%s111] sm:$0xff]
      %v118 = vld [vmem:[%s111 + $0x8] sm:$0xff]
      %v119 = vld [vmem:[%s111 + $0x10] sm:$0xff]
      %v120 = vld [vmem:[%s111 + $0x18] sm:$0xff]
      %v121 = vld [vmem:[%s111 + $0x20] sm:$0xff]
      %v122 = vld [vmem:[%s111 + $0x28] sm:$0xff]
      %v123 = vld [vmem:[%s111 + $0x30] sm:$0xff]
      %v124 = vld [vmem:[%s111 + $0x38] sm:$0xff]
      %v125 = vld [vmem:[%s111 + $0x40] sm:$0xff]
      %v126 = vld [vmem:[%s111 + $0x48] sm:$0xff]
      %v127 = vld [vmem:[%s111 + $0x50] sm:$0xff]
      %v128 = vld [vmem:[%s111 + $0x58] sm:$0xff]
      %v129 = vld [vmem:[%s111 + $0x60] sm:$0xff]
      %v130 = vld [vmem:[%s111 + $0x68] sm:$0xff]
      %v131 = vld [vmem:[%s111 + $0x70] sm:$0xff]
      %v132 = vld [vmem:[%s111 + $0x78] sm:$0xff]
      %v133 = vld [vmem:[%s111 + $0x80] sm:$0xff]
      %v134 = vld [vmem:[%s111 + $0x88] sm:$0xff]
      %v135 = vld [vmem:[%s111 + $0x90] sm:$0xff]
      %v136 = vld [vmem:[%s111 + $0x98] sm:$0xff]
      %v137 = vld [vmem:[%s111 + $0xa0] sm:$0xff]
      %v138 = vld [vmem:[%s111 + $0xa8] sm:$0xff]
      %v139 = vld [vmem:[%s111 + $0xb0] sm:$0xff]
      %v140 = vld [vmem:[%s111 + $0xb8] sm:$0xff]
      %v141 = vld [vmem:[%s111 + $0xc0] sm:$0xff]
      %v142 = vld [vmem:[%s111 + $0xc8] sm:$0xff]
      %v143 = vld [vmem:[%s111 + $0xd0] sm:$0xff]
      %v144 = vld [vmem:[%s111 + $0xd8] sm:$0xff]
      %v145 = vld [vmem:[%s111 + $0xe0] sm:$0xff]
      %v146 = vld [vmem:[%s111 + $0xe8] sm:$0xff]
      %v147 = vld [vmem:[%s111 + $0xf0] sm:$0xff]
      %v148 = vld [vmem:[%s111 + $0xf8] sm:$0xff]
      %v149 = vadd.f32 %v117, %v118
      %v150 = vadd.f32 %v149, %v119
      %v151 = vadd.f32 %v150, %v120
      %v152 = vadd.f32 %v151, %v121
      %v153 = vadd.f32 %v152, %v122
      %v154 = vadd.f32 %v153, %v123
      %v155 = vadd.f32 %v154, %v124
      %v156 = vadd.f32 %v155, %v125
      %v157 = vadd.f32 %v156, %v126
      %v158 = vadd.f32 %v157, %v127
      %v159 = vadd.f32 %v158, %v128
      %v160 = vadd.f32 %v159, %v129
      %v161 = vadd.f32 %v160, %v130
      %v162 = vadd.f32 %v161, %v131
      %v163 = vadd.f32 %v162, %v132
      %v164 = vadd.f32 %v163, %v133
      %v165 = vadd.f32 %v164, %v134
      %v166 = vadd.f32 %v165, %v135
      %v167 = vadd.f32 %v166, %v136
      %v168 = vadd.f32 %v167, %v137
      %v169 = vadd.f32 %v168, %v138
      %v170 = vadd.f32 %v169, %v139
      %v171 = vadd.f32 %v170, %v140
      %v172 = vadd.f32 %v171, %v141
      %v173 = vadd.f32 %v172, %v142
      %v174 = vadd.f32 %v173, %v143
      %v175 = vadd.f32 %v174, %v144
      %v176 = vadd.f32 %v175, %v145
      %v177 = vadd.f32 %v176, %v146
      %v178 = vadd.f32 %v177, %v147
      %v179 = vadd.f32 %v178, %v148
      %180 = vadd.xlane.f32.xlu0 %v179
      %v181 = vpop.xlane.xlu0 %180
      %v182 = vrcp.pop 4096.0
      %v183 = vmul.f32 %v181, %v182
      %v184 = vsub.f32 %v117, %v183
      %v185 = vsub.f32 %v118, %v183
      %v186 = vsub.f32 %v119, %v183
      %v187 = vsub.f32 %v120, %v183
      %v188 = vsub.f32 %v121, %v183
      %v189 = vsub.f32 %v122, %v183
      %v190 = vsub.f32 %v123, %v183
      %v191 = vsub.f32 %v124, %v183
      %v192 = vsub.f32 %v125, %v183
      %v193 = vsub.f32 %v126, %v183
      %v194 = vsub.f32 %v127, %v183
      %v195 = vsub.f32 %v128, %v183
      %v196 = vsub.f32 %v129, %v183
      %v197 = vsub.f32 %v130, %v183
      %v198 = vsub.f32 %v131, %v183
      %v199 = vsub.f32 %v132, %v183
      %v200 = vsub.f32 %v133, %v183
      %v201 = vsub.f32 %v134, %v183
      %v202 = vsub.f32 %v135, %v183
      %v203 = vsub.f32 %v136, %v183
      %v204 = vsub.f32 %v137, %v183
      %v205 = vsub.f32 %v138, %v183
      %v206 = vsub.f32 %v139, %v183
      %v207 = vsub.f32 %v140, %v183
      %v208 = vsub.f32 %v141, %v183
      %v209 = vsub.f32 %v142, %v183
      %v210 = vsub.f32 %v143, %v183
      %v211 = vsub.f32 %v144, %v183
      %v212 = vsub.f32 %v145, %v183
      %v213 = vsub.f32 %v146, %v183
      %v214 = vsub.f32 %v147, %v183
      %v215 = vsub.f32 %v148, %v183
      %v216 = vmul.f32 %v184, %v184
      %v217 = vmul.f32 %v185, %v185
      %v218 = vmul.f32 %v186, %v186
      %v219 = vmul.f32 %v187, %v187
      %v220 = vmul.f32 %v188, %v188
      %v221 = vmul.f32 %v189, %v189
      %v222 = vmul.f32 %v190, %v190
      %v223 = vmul.f32 %v191, %v191
      %v224 = vmul.f32 %v192, %v192
      %v225 = vmul.f32 %v193, %v193
      %v226 = vmul.f32 %v194, %v194
      %v227 = vmul.f32 %v195, %v195
      %v228 = vmul.f32 %v196, %v196
      %v229 = vmul.f32 %v197, %v197
      %v230 = vmul.f32 %v198, %v198
      %v231 = vmul.f32 %v199, %v199
      %v232 = vmul.f32 %v200, %v200
      %v233 = vmul.f32 %v201, %v201
      %v234 = vmul.f32 %v202, %v202
      %v235 = vmul.f32 %v203, %v203
      %v236 = vmul.f32 %v204, %v204
      %v237 = vmul.f32 %v205, %v205
      %v238 = vmul.f32 %v206, %v206
      %v239 = vmul.f32 %v207, %v207
      %v240 = vmul.f32 %v208, %v208
      %v241 = vmul.f32 %v209, %v209
      %v242 = vmul.f32 %v210, %v210
      %v243 = vmul.f32 %v211, %v211
      %v244 = vmul.f32 %v212, %v212
      %v245 = vmul.f32 %v213, %v213
      %v246 = vmul.f32 %v214, %v214
      %v247 = vmul.f32 %v215, %v215
      %v248 = vadd.f32 %v216, %v217
      %v249 = vadd.f32 %v248, %v218
      %v250 = vadd.f32 %v249, %v219
      %v251 = vadd.f32 %v250, %v220
      %v252 = vadd.f32 %v251, %v221
      %v253 = vadd.f32 %v252, %v222
      %v254 = vadd.f32 %v253, %v223
      %v255 = vadd.f32 %v254, %v224
      %v256 = vadd.f32 %v255, %v225
      %v257 = vadd.f32 %v256, %v226
      %v258 = vadd.f32 %v257, %v227
      %v259 = vadd.f32 %v258, %v228
      %v260 = vadd.f32 %v259, %v229
      %v261 = vadd.f32 %v260, %v230
      %v262 = vadd.f32 %v261, %v231
      %v263 = vadd.f32 %v262, %v232
      %v264 = vadd.f32 %v263, %v233
      %v265 = vadd.f32 %v264, %v234
      %v266 = vadd.f32 %v265, %v235
      %v267 = vadd.f32 %v266, %v236
      %v268 = vadd.f32 %v267, %v237
      %v269 = vadd.f32 %v268, %v238
      %v270 = vadd.f32 %v269, %v239
      %v271 = vadd.f32 %v270, %v240
      %v272 = vadd.f32 %v271, %v241
      %v273 = vadd.f32 %v272, %v242
      %v274 = vadd.f32 %v273, %v243
      %v275 = vadd.f32 %v274, %v244
      %v276 = vadd.f32 %v275, %v245
      %v277 = vadd.f32 %v276, %v246
      %v278 = vadd.f32 %v277, %v247
      %279 = vadd.xlane.f32.xlu0 %v278
      %v280 = vpop.xlane.xlu0 %279
      %v281 = vmul.f32 %v280, %v182
      %v282 = vadd.f32 %v281, 1e-05
      %v283 = vrsqrt.pop %v282
      %v284 = vmul.f32 %v184, %v283
      %v285 = vmul.f32 %v185, %v283
      %v286 = vmul.f32 %v186, %v283
      %v287 = vmul.f32 %v187, %v283
      %v288 = vmul.f32 %v188, %v283
      %v289 = vmul.f32 %v189, %v283
      %v290 = vmul.f32 %v190, %v283
      %v291 = vmul.f32 %v191, %v283
      %v292 = vmul.f32 %v192, %v283
      %v293 = vmul.f32 %v193, %v283
      %v294 = vmul.f32 %v194, %v283
      %v295 = vmul.f32 %v195, %v283
      %v296 = vmul.f32 %v196, %v283
      %v297 = vmul.f32 %v197, %v283
      %v298 = vmul.f32 %v198, %v283
      %v299 = vmul.f32 %v199, %v283
      %v300 = vmul.f32 %v200, %v283
      %v301 = vmul.f32 %v201, %v283
      %v302 = vmul.f32 %v202, %v283
      %v303 = vmul.f32 %v203, %v283
      %v304 = vmul.f32 %v204, %v283
      %v305 = vmul.f32 %v205, %v283
      %v306 = vmul.f32 %v206, %v283
      %v307 = vmul.f32 %v207, %v283
      %v308 = vmul.f32 %v208, %v283
      %v309 = vmul.f32 %v209, %v283
      %v310 = vmul.f32 %v210, %v283
      %v311 = vmul.f32 %v211, %v283
      %v312 = vmul.f32 %v212, %v283
      %v313 = vmul.f32 %v213, %v283
      %v314 = vmul.f32 %v214, %v283
      %v315 = vmul.f32 %v215, %v283
      %vm316 = vcmp.ge.f32.partialorder %v284, 0.0
      %vm317 = vcmp.ge.f32.partialorder %v285, 0.0
      %vm318 = vcmp.ge.f32.partialorder %v286, 0.0
      %vm319 = vcmp.ge.f32.partialorder %v287, 0.0
      %vm320 = vcmp.ge.f32.partialorder %v288, 0.0
      %vm321 = vcmp.ge.f32.partialorder %v289, 0.0
      %vm322 = vcmp.ge.f32.partialorder %v290, 0.0
      %vm323 = vcmp.ge.f32.partialorder %v291, 0.0
      %vm324 = vcmp.ge.f32.partialorder %v292, 0.0
      %vm325 = vcmp.ge.f32.partialorder %v293, 0.0
      %vm326 = vcmp.ge.f32.partialorder %v294, 0.0
      %vm327 = vcmp.ge.f32.partialorder %v295, 0.0
      %vm328 = vcmp.ge.f32.partialorder %v296, 0.0
      %vm329 = vcmp.ge.f32.partialorder %v297, 0.0
      %vm330 = vcmp.ge.f32.partialorder %v298, 0.0
      %vm331 = vcmp.ge.f32.partialorder %v299, 0.0
      %vm332 = vcmp.ge.f32.partialorder %v300, 0.0
      %vm333 = vcmp.ge.f32.partialorder %v301, 0.0
      %vm334 = vcmp.ge.f32.partialorder %v302, 0.0
      %vm335 = vcmp.ge.f32.partialorder %v303, 0.0
      %vm336 = vcmp.ge.f32.partialorder %v304, 0.0
      %vm337 = vcmp.ge.f32.partialorder %v305, 0.0
      %vm338 = vcmp.ge.f32.partialorder %v306, 0.0
      %vm339 = vcmp.ge.f32.partialorder %v307, 0.0
      %vm340 = vcmp.ge.f32.partialorder %v308, 0.0
      %vm341 = vcmp.ge.f32.partialorder %v309, 0.0
      %vm342 = vcmp.ge.f32.partialorder %v310, 0.0
      %vm343 = vcmp.ge.f32.partialorder %v311, 0.0
      %vm344 = vcmp.ge.f32.partialorder %v312, 0.0
      %vm345 = vcmp.ge.f32.partialorder %v313, 0.0
      %vm346 = vcmp.ge.f32.partialorder %v314, 0.0
      %vm347 = vcmp.ge.f32.partialorder %v315, 0.0
      %v348 = vmul.f32 %v284, 0.2
      %v349 = vmul.f32 %v285, 0.2
      %v350 = vmul.f32 %v286, 0.2
      %v351 = vmul.f32 %v287, 0.2
      %v352 = vmul.f32 %v288, 0.2
      %v353 = vmul.f32 %v289, 0.2
      %v354 = vmul.f32 %v290, 0.2
      %v355 = vmul.f32 %v291, 0.2
      %v356 = vmul.f32 %v292, 0.2
      %v357 = vmul.f32 %v293, 0.2
      %v358 = vmul.f32 %v294, 0.2
      %v359 = vmul.f32 %v295, 0.2
      %v360 = vmul.f32 %v296, 0.2
      %v361 = vmul.f32 %v297, 0.2
      %v362 = vmul.f32 %v298, 0.2
      %v363 = vmul.f32 %v299, 0.2
      %v364 = vmul.f32 %v300, 0.2
      %v365 = vmul.f32 %v301, 0.2
      %v366 = vmul.f32 %v302, 0.2
      %v367 = vmul.f32 %v303, 0.2
      %v368 = vmul.f32 %v304, 0.2
      %v369 = vmul.f32 %v305, 0.2
      %v370 = vmul.f32 %v306, 0.2
      %v371 = vmul.f32 %v307, 0.2
      %v372 = vmul.f32 %v308, 0.2
      %v373 = vmul.f32 %v309, 0.2
      %v374 = vmul.f32 %v310, 0.2
      %v375 = vmul.f32 %v311, 0.2
      %v376 = vmul.f32 %v312, 0.2
      %v377 = vmul.f32 %v313, 0.2
      %v378 = vmul.f32 %v314, 0.2
      %v379 = vmul.f32 %v315, 0.2
      %v380 = vsel %vm316, %v284, %v348
      %v381 = vsel %vm317, %v285, %v349
      %v382 = vsel %vm318, %v286, %v350
      %v383 = vsel %vm319, %v287, %v351
      %v384 = vsel %vm320, %v288, %v352
      %v385 = vsel %vm321, %v289, %v353
      %v386 = vsel %vm322, %v290, %v354
      %v387 = vsel %vm323, %v291, %v355
      %v388 = vsel %vm324, %v292, %v356
      %v389 = vsel %vm325, %v293, %v357
      %v390 = vsel %vm326, %v294, %v358
      %v391 = vsel %vm327, %v295, %v359
      %v392 = vsel %vm328, %v296, %v360
      %v393 = vsel %vm329, %v297, %v361
      %v394 = vsel %vm330, %v298, %v362
      %v395 = vsel %vm331, %v299, %v363
      %v396 = vsel %vm332, %v300, %v364
      %v397 = vsel %vm333, %v301, %v365
      %v398 = vsel %vm334, %v302, %v366
      %v399 = vsel %vm335, %v303, %v367
      %v400 = vsel %vm336, %v304, %v368
      %v401 = vsel %vm337, %v305, %v369
      %v402 = vsel %vm338, %v306, %v370
      %v403 = vsel %vm339, %v307, %v371
      %v404 = vsel %vm340, %v308, %v372
      %v405 = vsel %vm341, %v309, %v373
      %v406 = vsel %vm342, %v310, %v374
      %v407 = vsel %vm343, %v311, %v375
      %v408 = vsel %vm344, %v312, %v376
      %v409 = vsel %vm345, %v313, %v377
      %v410 = vsel %vm346, %v314, %v378
      %v411 = vsel %vm347, %v315, %v379
      %412 = vst [vmem:[%s116] sm:$0xff] %v380
      %413 = vst [vmem:[%s116 + $0x8] sm:$0xff] %v381
      %414 = vst [vmem:[%s116 + $0x10] sm:$0xff] %v382
      %415 = vst [vmem:[%s116 + $0x18] sm:$0xff] %v383
      %416 = vst [vmem:[%s116 + $0x20] sm:$0xff] %v384
      %417 = vst [vmem:[%s116 + $0x28] sm:$0xff] %v385
      %418 = vst [vmem:[%s116 + $0x30] sm:$0xff] %v386
      %419 = vst [vmem:[%s116 + $0x38] sm:$0xff] %v387
      %420 = vst [vmem:[%s116 + $0x40] sm:$0xff] %v388
      %421 = vst [vmem:[%s116 + $0x48] sm:$0xff] %v389
      %422 = vst [vmem:[%s116 + $0x50] sm:$0xff] %v390
      %423 = vst [vmem:[%s116 + $0x58] sm:$0xff] %v391
      %424 = vst [vmem:[%s116 + $0x60] sm:$0xff] %v392
      %425 = vst [vmem:[%s116 + $0x68] sm:$0xff] %v393
      %426 = vst [vmem:[%s116 + $0x70] sm:$0xff] %v394
      %427 = vst [vmem:[%s116 + $0x78] sm:$0xff] %v395
      %428 = vst [vmem:[%s116 + $0x80] sm:$0xff] %v396
      %429 = vst [vmem:[%s116 + $0x88] sm:$0xff] %v397
      %430 = vst [vmem:[%s116 + $0x90] sm:$0xff] %v398
      %431 = vst [vmem:[%s116 + $0x98] sm:$0xff] %v399
      %432 = vst [vmem:[%s116 + $0xa0] sm:$0xff] %v400
      %433 = vst [vmem:[%s116 + $0xa8] sm:$0xff] %v401
      %434 = vst [vmem:[%s116 + $0xb0] sm:$0xff] %v402
      %435 = vst [vmem:[%s116 + $0xb8] sm:$0xff] %v403
      %436 = vst [vmem:[%s116 + $0xc0] sm:$0xff] %v404
      %437 = vst [vmem:[%s116 + $0xc8] sm:$0xff] %v405
      %438 = vst [vmem:[%s116 + $0xd0] sm:$0xff] %v406
      %439 = vst [vmem:[%s116 + $0xd8] sm:$0xff] %v407
      %440 = vst [vmem:[%s116 + $0xe0] sm:$0xff] %v408
      %441 = vst [vmem:[%s116 + $0xe8] sm:$0xff] %v409
      %442 = vst [vmem:[%s116 + $0xf0] sm:$0xff] %v410
      %443 = vst [vmem:[%s116 + $0xf8] sm:$0xff] %v411
      %p444 = scmp.lt.s32.totalorder %s12, 1
      %s445 = scalar_select %p444, %s12, 1
      %s446 = smul.addr %s445, 32
      %s447 = smul.addr %s446, 8
      %s448 = scalar_lea.vmem %s1, %s447
      // Predicated region
      $region25: #{unet_block_outer_forward.14} parent=23 // pred_check
        %p449 = pneg %p56
      $region26: #{unet_block_outer_forward.14} parent=23 // pred_check_branch
        %451 = sbr.rel (%p449) target = $region28
      $region27: #{unet_block_outer_forward.14} parent=23 // pred_region
        _
      $region28: #{unet_block_outer_forward.14} parent=23 // pred_fallthru
        _
    $region24: #{unet_block_outer_forward.14} parent=5 // pred_fallthru
      _
    %p452 = scmp.le.s32.totalorder 2, %s7
    // Predicated region
    $region29: #{unet_block_outer_forward.14} parent=5 // pred_check
      %p453 = pneg %p452
    $region30: #{unet_block_outer_forward.14} parent=5 // pred_check_branch
      %455 = sbr.rel (%p453) target = $region32
    $region31: #{unet_block_outer_forward.14} parent=5 // pred_region
      %s456 = ssub.s32 %s7, 2
      // Predicated region
      $region33: #{unet_block_outer_forward.14} parent=31 // pred_check
        %p457 = pneg %p62
      $region34: #{unet_block_outer_forward.14} parent=31 // pred_check_branch
        %459 = sbr.rel (%p457) target = $region36
      $region35: #{unet_block_outer_forward.14} parent=31 // pred_region
        %p460 = scmp.lt.s32.totalorder %s13, 1
        %s461 = scalar_select %p460, %s13, 1
        %s462 = smul.addr %s461, 32
        %s463 = smul.addr %s462, 8
        %s464 = scalar_lea.vmem %s1, %s463
      $region36: #{unet_block_outer_forward.14} parent=31 // pred_fallthru
        _
    $region32: #{unet_block_outer_forward.14} parent=5 // pred_fallthru
      _
  $region6: #{unet_block_outer_forward.14} parent=0 // loop_footer
    %s11 = sadd.s32 1, %s7
  $region7: #{unet_block_outer_forward.14} parent=0 // loop_footer_branch
    %6 = sbr.rel target = $region3
  $region8: #{unet_block_outer_forward.14} parent=0 // loop_exit
    _

// kernel: unet_block_outer_forward.15
$region0: #{unet_block_outer_forward.15}
  #allocation0 [shape = 'u32[]', space=smem, size = 0x4, offset = 0x4, fixed_abs, tag = 'smem constant byte address 0x4 - core index']
  #allocation1 [shape = 'u32[144,128]{1,0:T(1,128)}', space=vmem, size = 0x12000, scoped, tag = 'internal scratch']
  %s0 = inlined_call_operand.vmem [shape: bf16[4,8], index: 0, kind: input, shape index: {}]
  %s1 = inlined_call_operand.vmem [shape: bf16[8,8192], index: 1, kind: input, shape index: {}]
  %s2 = inlined_call_operand.vmem [shape: f32[4,1], index: 2, kind: input, shape index: {}]
  %s3 = inlined_call_operand.vmem [shape: f32[4,8192], index: 3, kind: output, shape index: {}]
  %s4 = sld [smem:[#allocation0]]
  $region45: #{unet_block_outer_forward.15} parent=0
    _
  %s6 = ssub.s32 1, %s4
  %s7 = scalar_select 0, %s6, %s4
  loop: start=0, step=1, limit=10
  $region2: #{unet_block_outer_forward.15} parent=0 // loop_pre_header
    _
  $region3: #{unet_block_outer_forward.15} parent=0 // loop_header
    %s9 = sphi 0, %s13
    %p10 = scmp.ge.s32.totalorder %s9, 10
    %s17 = sphi 0, %s17
    %s19 = sphi 0, %s17
    %s20 = sphi 0, %s19
    %s34 = sphi 0, %s20
    %s40 = sphi 0, %s42
    %s43 = sphi 0, %s40
    %s44 = sphi 0, %s43
    %s60 = sphi 0, %s44
    %s64 = sphi 0, %s64
    %s66 = sphi 0, %s64
    %s67 = sphi 0, %s66
    %s81 = sphi 0, %s67
    %s87 = sphi 0, %s89
    %s90 = sphi 0, %s87
    %s91 = sphi 0, %s90
    %s107 = sphi 0, %s91
  $region4: #{unet_block_outer_forward.15} parent=0 // loop_header_branch
    %12 = sbr.rel (%p10) target = $region8
  $region5: #{unet_block_outer_forward.15} parent=0 // loop_body
    %s14 = ssub.s32 %s9, 1
    %s15 = ssub.s32 %s9, 2
    %s16 = sadd.s32 %s9, 1
    %s18 = sadd.s32 %s17, 1
    %p21 = scmp.eq.s32.totalorder %s9, 7
    %p22 = scmp.ne.s32.totalorder %s17, %s19
    %p23 = scmp.eq.s32.totalorder %s9, 0
    %p24 = por %p22, %p23
    %p25 = scmp.ne.s32.totalorder %s17, %s19
    %p26 = scmp.eq.s32.totalorder %s14, 7
    %p27 = por %p25, %p26
    %p28 = scmp.ne.s32.totalorder %s19, %s20
    %p29 = scmp.eq.s32.totalorder %s14, 0
    %p30 = por %p28, %p29
    %p31 = scmp.ne.s32.totalorder %s19, %s20
    %p32 = scmp.eq.s32.totalorder %s15, 7
    %p33 = por %p31, %p32
    %p35 = scmp.ne.s32.totalorder %s20, %s34
    %p36 = scmp.eq.s32.totalorder %s15, 0
    %p37 = por %p35, %p36
    %s38 = ssub.s32 %s9, %s16
    %p39 = scmp.eq.s32.totalorder %s38, 0
    %s41 = sadd.s32 %s40, 1
    %s42 = scalar_select %p39, %s40, %s41
    %p45 = pneg %p39
    %p46 = scmp.eq.s32.totalorder %s9, 7
    %p47 = por %p45, %p46
    %p48 = scmp.ne.s32.totalorder %s40, %s43
    %p49 = scmp.eq.s32.totalorder %s9, 0
    %p50 = por %p48, %p49
    %p51 = scmp.ne.s32.totalorder %s40, %s43
    %p52 = scmp.eq.s32.totalorder %s14, 7
    %p53 = por %p51, %p52
    %p54 = scmp.ne.s32.totalorder %s43, %s44
    %p55 = scmp.eq.s32.totalorder %s14, 0
    %p56 = por %p54, %p55
    %p57 = scmp.ne.s32.totalorder %s43, %s44
    %p58 = scmp.eq.s32.totalorder %s15, 7
    %p59 = por %p57, %p58
    %p61 = scmp.ne.s32.totalorder %s44, %s60
    %p62 = scmp.eq.s32.totalorder %s15, 0
    %p63 = por %p61, %p62
    %s65 = sadd.s32 %s64, 1
    %p68 = scmp.eq.s32.totalorder %s9, 7
    %p69 = scmp.ne.s32.totalorder %s64, %s66
    %p70 = scmp.eq.s32.totalorder %s9, 0
    %p71 = por %p69, %p70
    %p72 = scmp.ne.s32.totalorder %s64, %s66
    %p73 = scmp.eq.s32.totalorder %s14, 7
    %p74 = por %p72, %p73
    %p75 = scmp.ne.s32.totalorder %s66, %s67
    %p76 = scmp.eq.s32.totalorder %s14, 0
    %p77 = por %p75, %p76
    %p78 = scmp.ne.s32.totalorder %s66, %s67
    %p79 = scmp.eq.s32.totalorder %s15, 7
    %p80 = por %p78, %p79
    %p82 = scmp.ne.s32.totalorder %s67, %s81
    %p83 = scmp.eq.s32.totalorder %s15, 0
    %p84 = por %p82, %p83
    %s85 = ssub.s32 %s9, %s16
    %p86 = scmp.eq.s32.totalorder %s85, 0
    %s88 = sadd.s32 %s87, 1
    %s89 = scalar_select %p86, %s87, %s88
    %p92 = pneg %p86
    %p93 = scmp.eq.s32.totalorder %s9, 7
    %p94 = por %p92, %p93
    %p95 = scmp.ne.s32.totalorder %s87, %s90
    %p96 = scmp.eq.s32.totalorder %s9, 0
    %p97 = por %p95, %p96
    %p98 = scmp.ne.s32.totalorder %s87, %s90
    %p99 = scmp.eq.s32.totalorder %s14, 7
    %p100 = por %p98, %p99
    %p101 = scmp.ne.s32.totalorder %s90, %s91
    %p102 = scmp.eq.s32.totalorder %s14, 0
    %p103 = por %p101, %p102
    %p104 = scmp.ne.s32.totalorder %s90, %s91
    %p105 = scmp.eq.s32.totalorder %s15, 7
    %p106 = por %p104, %p105
    %p108 = scmp.ne.s32.totalorder %s91, %s107
    %p109 = scmp.eq.s32.totalorder %s15, 0
    %p110 = por %p108, %p109
    %p111 = scmp.le.s32.totalorder 1, %s9
    %p112 = scmp.lt.s32.totalorder %s9, 9
    %p113 = pnand %p111, %p112
    %p114 = pneg %p113
    // Predicated region
    $region9: #{unet_block_outer_forward.15} parent=5 // pred_check
      _
    $region10: #{unet_block_outer_forward.15} parent=5 // pred_check_branch
      %116 = sbr.rel (%p113) target = $region12
    $region11: #{unet_block_outer_forward.15} parent=5 // pred_region
      %s117 = ssub.s32 %s9, 1
      // Predicated region
      $region13: #{unet_block_outer_forward.15} parent=11 // pred_check
        %p118 = pneg %p30
      $region14: #{unet_block_outer_forward.15} parent=11 // pred_check_branch
        %120 = sbr.rel (%p118) target = $region16
      $region15: #{unet_block_outer_forward.15} parent=11 // pred_region
        _
      $region16: #{unet_block_outer_forward.15} parent=11 // pred_fallthru
        _
      // Predicated region
      $region17: #{unet_block_outer_forward.15} parent=11 // pred_check
        %p121 = pneg %p77
      $region18: #{unet_block_outer_forward.15} parent=11 // pred_check_branch
        %123 = sbr.rel (%p121) target = $region20
      $region19: #{unet_block_outer_forward.15} parent=11 // pred_region
        _
      $region20: #{unet_block_outer_forward.15} parent=11 // pred_fallthru
        _
    $region12: #{unet_block_outer_forward.15} parent=5 // pred_fallthru
      _
    %p124 = scmp.lt.s32.totalorder %s9, 8
    // Predicated region
    $region21: #{unet_block_outer_forward.15} parent=5 // pred_check
      %p125 = pneg %p124
    $region22: #{unet_block_outer_forward.15} parent=5 // pred_check_branch
      %127 = sbr.rel (%p125) target = $region24
    $region23: #{unet_block_outer_forward.15} parent=5 // pred_region
      // Predicated region
      $region25: #{unet_block_outer_forward.15} parent=23 // pred_check
        %p128 = pneg %p50
      $region26: #{unet_block_outer_forward.15} parent=23 // pred_check_branch
        %130 = sbr.rel (%p128) target = $region28
      $region27: #{unet_block_outer_forward.15} parent=23 // pred_region
        %s131 = smul.u32 8, %s9
        %p132 = scmp.lt.s32.totalorder %s131, 63
        %s133 = scalar_select %p132, %s131, 63
        %s134 = smul.addr %s133, 4
        %s135 = scalar_lea.vmem %s1, %s134
        %s136 = smul.u32 8, %s9
      $region28: #{unet_block_outer_forward.15} parent=23 // pred_fallthru
        _
    $region24: #{unet_block_outer_forward.15} parent=5 // pred_fallthru
      _
    %p137 = scmp.le.s32.totalorder 1, %s9
    %p138 = scmp.lt.s32.totalorder %s9, 9
    %p139 = pnand %p137, %p138
    %p140 = pneg %p139
    // Predicated region
    $region29: #{unet_block_outer_forward.15} parent=5 // pred_check
      _
    $region30: #{unet_block_outer_forward.15} parent=5 // pred_check_branch
      %142 = sbr.rel (%p139) target = $region32
    $region31: #{unet_block_outer_forward.15} parent=5 // pred_region
      %s143 = ssub.s32 %s9, 1
      %p144 = pneg %p30
      %p145 = pneg %p27
      %s146 = smul.u32 8, %s14
      %p147 = scmp.lt.s32.totalorder %s146, 63
      %s148 = scalar_select %p147, %s146, 63
      %s149 = smul.addr %s148, 4
      %s150 = scalar_lea.vmem %s1, %s149
      %p151 = pneg %p56
      %p152 = pneg %p53
      %p153 = pneg %p77
      %p154 = pneg %p74
      %p155 = pneg %p103
      %p156 = pneg %p100
      %s157 = smul.u32 8, %s14
      %p158 = scmp.lt.s32.totalorder %s157, 63
      %s159 = scalar_select %p158, %s157, 63
      %s160 = smul.addr %s159, 4
      %s161 = scalar_lea.vmem %s3, %s160
      %s162 = smul.u32 8, %s14
      %p163 = scmp.lt.s32.totalorder %s162, 63
      %s164 = scalar_select %p163, %s162, 63
      %s165 = smul.addr %s164, 4
      %s166 = scalar_lea.vmem %s1, %s165
      %s167 = smul.u32 8, %s14
      %s168 = smul.u32 8, %s14
      %p169 = scmp.lt.s32.totalorder %s168, 63
      %s170 = scalar_select %p169, %s168, 63
      %s171 = smul.addr %s170, 4
      %s172 = scalar_lea.vmem %s3, %s171
      %s173 = smul.u32 8, %s14
      %v175 = vld [vmem:[%s0] sm:$0x3]
      %v176 = vld [vmem:[%s166] sm:$0xff]
      %v177 = vld [vmem:[%s166 + $0x8] sm:$0xff]
      %v178 = vld [vmem:[%s166 + $0x10] sm:$0xff]
      %v179 = vld [vmem:[%s166 + $0x18] sm:$0xff]
      %v180 = vld [vmem:[%s2] sm:$0xf]
      %182 = vset.pattern.permute.xlu0 0
      %183 = vperm.xlu0 %182, %v180
      %v184 = vpop.permute.xlu0 %183
      %v190 = vunpack.c.l.b16 %v176
      %v191 = vunpack.c.h.b16 %v176
      %v192 = vunpack.c.l.b16 %v177
      %v193 = vunpack.c.h.b16 %v177
      %v194 = vunpack.c.l.b16 %v178
      %v195 = vunpack.c.h.b16 %v178
      %v196 = vunpack.c.l.b16 %v179
      %v197 = vunpack.c.h.b16 %v179
      %v198 = vpack.c.b16 %v190, %v190
      %v199 = vpack.c.b16 %v191, %v191
      %v200 = vpack.c.b16 %v192, %v192
      %v201 = vpack.c.b16 %v193, %v193
      %v202 = vpack.c.b16 %v194, %v194
      %v203 = vpack.c.b16 %v195, %v195
      %v204 = vpack.c.b16 %v196, %v196
      %v205 = vpack.c.b16 %v197, %v197
      %vm206 = vcmask 64512
      %v208 = vsel %vm206, %v175, 0
      %vm210 = vcmask 1043456
      %v212 = vsel %vm210, %v198, 0
      %v215 = vsel %vm210, %v199, 0
      %v218 = vsel %vm210, %v200, 0
      %v221 = vsel %vm210, %v201, 0
      %v224 = vsel %vm210, %v202, 0
      %v227 = vsel %vm210, %v203, 0
      %v230 = vsel %vm210, %v204, 0
      %v233 = vsel %vm210, %v205, 0
      %235 = vmatprep.subr.bf16.mxu0 0
      %236 = vmatpush1.bf16.msra.mxu0 0
      %237 = vmatprep.subr.bf16.mxu0 0
      %238 = vmatpush1.bf16.msra.mxu0 0
      %239 = vmatprep.subr.bf16.mxu0 0
      %240 = vmatpush1.bf16.msra.mxu0 0
      %241 = vmatprep.subr.bf16.mxu0 0
      %242 = vmatpush1.bf16.msra.mxu0 0
      %243 = vmatprep.subr.bf16.mxu0 0
      %244 = vmatpush1.bf16.msra.mxu0 0
      %245 = vmatprep.subr.bf16.mxu0 0
      %246 = vmatpush1.bf16.msra.mxu0 0
      %247 = vmatprep.subr.bf16.mxu0 0
      %248 = vmatpush1.bf16.msra.mxu0 0
      %249 = vmatprep.subr.bf16.mxu0 %v215
      %250 = vmatpush1.bf16.msra.mxu0 %v212
      %251 = vmatprep.subr.bf16.mxu0 0
      %252 = vmatpush2.bf16.msra.mxu0 0
      %253 = vmatprep.subr.bf16.mxu0 0
      %254 = vmatpush2.bf16.msra.mxu0 0
      %255 = vmatprep.subr.bf16.mxu0 0
      %256 = vmatpush2.bf16.msra.mxu0 0
      %257 = vmatprep.subr.bf16.mxu0 0
      %258 = vmatpush2.bf16.msra.mxu0 0
      %259 = vmatprep.subr.bf16.mxu0 0
      %260 = vmatpush2.bf16.msra.mxu0 0
      %261 = vmatprep.subr.bf16.mxu0 0
      %262 = vmatpush2.bf16.msra.mxu0 0
      %263 = vmatprep.subr.bf16.mxu0 0
      %264 = vmatpush2.bf16.msra.mxu0 0
      %265 = vmatprep.subr.bf16.mxu0 0
      %266 = vmatpush2.bf16.msra.mxu0 0
      %267 = vmatprep.mubr.bf16.mxu0 0
      %268 = vmatmul.mubr.bf16.gmra.mxu0 %v208
      %v269 = vpop.f32.mrf.mxu0
      %v270 = vadd.f32 %v184, %v269
      %v271 = vpop.f32.mrf.mxu0
      %v272 = vadd.f32 %v184, %v271
      %v273 = vpop.f32.mrf.mxu0
      %v274 = vpop.f32.mrf.mxu0
      %275 = vdwg.mxu0
      %276 = vmatprep.subr.bf16.mxu0 0
      %277 = vmatpush1.bf16.msra.mxu0 0
      %278 = vmatprep.subr.bf16.mxu0 0
      %279 = vmatpush1.bf16.msra.mxu0 0
      %280 = vmatprep.subr.bf16.mxu0 0
      %281 = vmatpush1.bf16.msra.mxu0 0
      %282 = vmatprep.subr.bf16.mxu0 0
      %283 = vmatpush1.bf16.msra.mxu0 0
      %284 = vmatprep.subr.bf16.mxu0 0
      %285 = vmatpush1.bf16.msra.mxu0 0
      %286 = vmatprep.subr.bf16.mxu0 0
      %287 = vmatpush1.bf16.msra.mxu0 0
      %288 = vmatprep.subr.bf16.mxu0 0
      %289 = vmatpush1.bf16.msra.mxu0 0
      %290 = vmatprep.subr.bf16.mxu0 %v221
      %291 = vmatpush1.bf16.msra.mxu0 %v218
      %292 = vmatprep.subr.bf16.mxu0 0
      %293 = vmatpush2.bf16.msra.mxu0 0
      %294 = vmatprep.subr.bf16.mxu0 0
      %295 = vmatpush2.bf16.msra.mxu0 0
      %296 = vmatprep.subr.bf16.mxu0 0
      %297 = vmatpush2.bf16.msra.mxu0 0
      %298 = vmatprep.subr.bf16.mxu0 0
      %299 = vmatpush2.bf16.msra.mxu0 0
      %300 = vmatprep.subr.bf16.mxu0 0
      %301 = vmatpush2.bf16.msra.mxu0 0
      %302 = vmatprep.subr.bf16.mxu0 0
      %303 = vmatpush2.bf16.msra.mxu0 0
      %304 = vmatprep.subr.bf16.mxu0 0
      %305 = vmatpush2.bf16.msra.mxu0 0
      %306 = vmatprep.subr.bf16.mxu0 0
      %307 = vmatpush2.bf16.msra.mxu0 0
      %308 = vmatprep.mubr.bf16.mxu0 0
      %309 = vmatmul.mubr.bf16.gmra.mxu0 %v208
      %v310 = vpop.f32.mrf.mxu0
      %v311 = vadd.f32 %v184, %v310
      %v312 = vpop.f32.mrf.mxu0
      %v313 = vadd.f32 %v184, %v312
      %v314 = vpop.f32.mrf.mxu0
      %v315 = vpop.f32.mrf.mxu0
      %316 = vdwg.mxu0
      %317 = vmatprep.subr.bf16.mxu0 0
      %318 = vmatpush1.bf16.msra.mxu0 0
      %319 = vmatprep.subr.bf16.mxu0 0
      %320 = vmatpush1.bf16.msra.mxu0 0
      %321 = vmatprep.subr.bf16.mxu0 0
      %322 = vmatpush1.bf16.msra.mxu0 0
      %323 = vmatprep.subr.bf16.mxu0 0
      %324 = vmatpush1.bf16.msra.mxu0 0
      %325 = vmatprep.subr.bf16.mxu0 0
      %326 = vmatpush1.bf16.msra.mxu0 0
      %327 = vmatprep.subr.bf16.mxu0 0
      %328 = vmatpush1.bf16.msra.mxu0 0
      %329 = vmatprep.subr.bf16.mxu0 0
      %330 = vmatpush1.bf16.msra.mxu0 0
      %331 = vmatprep.subr.bf16.mxu0 %v227
      %332 = vmatpush1.bf16.msra.mxu0 %v224
      %333 = vmatprep.subr.bf16.mxu0 0
      %334 = vmatpush2.bf16.msra.mxu0 0
      %335 = vmatprep.subr.bf16.mxu0 0
      %336 = vmatpush2.bf16.msra.mxu0 0
      %337 = vmatprep.subr.bf16.mxu0 0
      %338 = vmatpush2.bf16.msra.mxu0 0
      %339 = vmatprep.subr.bf16.mxu0 0
      %340 = vmatpush2.bf16.msra.mxu0 0
      %341 = vmatprep.subr.bf16.mxu0 0
      %342 = vmatpush2.bf16.msra.mxu0 0
      %343 = vmatprep.subr.bf16.mxu0 0
      %344 = vmatpush2.bf16.msra.mxu0 0
      %345 = vmatprep.subr.bf16.mxu0 0
      %346 = vmatpush2.bf16.msra.mxu0 0
      %347 = vmatprep.subr.bf16.mxu0 0
      %348 = vmatpush2.bf16.msra.mxu0 0
      %349 = vmatprep.mubr.bf16.mxu0 0
      %350 = vmatmul.mubr.bf16.gmra.mxu0 %v208
      %v351 = vpop.f32.mrf.mxu0
      %v352 = vadd.f32 %v184, %v351
      %v353 = vpop.f32.mrf.mxu0
      %v354 = vadd.f32 %v184, %v353
      %v355 = vpop.f32.mrf.mxu0
      %v356 = vpop.f32.mrf.mxu0
      %357 = vdwg.mxu0
      %358 = vmatprep.subr.bf16.mxu0 0
      %359 = vmatpush1.bf16.msra.mxu0 0
      %360 = vmatprep.subr.bf16.mxu0 0
      %361 = vmatpush1.bf16.msra.mxu0 0
      %362 = vmatprep.subr.bf16.mxu0 0
      %363 = vmatpush1.bf16.msra.mxu0 0
      %364 = vmatprep.subr.bf16.mxu0 0
      %365 = vmatpush1.bf16.msra.mxu0 0
      %366 = vmatprep.subr.bf16.mxu0 0
      %367 = vmatpush1.bf16.msra.mxu0 0
      %368 = vmatprep.subr.bf16.mxu0 0
      %369 = vmatpush1.bf16.msra.mxu0 0
      %370 = vmatprep.subr.bf16.mxu0 0
      %371 = vmatpush1.bf16.msra.mxu0 0
      %372 = vmatprep.subr.bf16.mxu0 %v233
      %373 = vmatpush1.bf16.msra.mxu0 %v230
      %374 = vmatprep.subr.bf16.mxu0 0
      %375 = vmatpush2.bf16.msra.mxu0 0
      %376 = vmatprep.subr.bf16.mxu0 0
      %377 = vmatpush2.bf16.msra.mxu0 0
      %378 = vmatprep.subr.bf16.mxu0 0
      %379 = vmatpush2.bf16.msra.mxu0 0
      %380 = vmatprep.subr.bf16.mxu0 0
      %381 = vmatpush2.bf16.msra.mxu0 0
      %382 = vmatprep.subr.bf16.mxu0 0
      %383 = vmatpush2.bf16.msra.mxu0 0
      %384 = vmatprep.subr.bf16.mxu0 0
      %385 = vmatpush2.bf16.msra.mxu0 0
      %386 = vmatprep.subr.bf16.mxu0 0
      %387 = vmatpush2.bf16.msra.mxu0 0
      %388 = vmatprep.subr.bf16.mxu0 0
      %389 = vmatpush2.bf16.msra.mxu0 0
      %390 = vmatprep.mubr.bf16.mxu0 0
      %391 = vmatmul.mubr.bf16.gmra.mxu0 %v208
      %v392 = vpop.f32.mrf.mxu0
      %v393 = vadd.f32 %v184, %v392
      %v394 = vpop.f32.mrf.mxu0
      %v395 = vadd.f32 %v184, %v394
      %v396 = vpop.f32.mrf.mxu0
      %v397 = vpop.f32.mrf.mxu0
      %398 = vdwg.mxu0
      %v407 = vcombine.low %v270, %v272
      %v408 = vcombine.low %v311, %v313
      %v409 = vcombine.low %v352, %v354
      %v410 = vcombine.low %v393, %v395
      %415 = vst [vmem:[%s172] sm:$0xff] %v407
      %416 = vst [vmem:[%s172 + $0x8] sm:$0xff] %v408
      %417 = vst [vmem:[%s172 + $0x10] sm:$0xff] %v409
      %418 = vst [vmem:[%s172 + $0x18] sm:$0xff] %v410
      %s419 = smul.u32 8, %s14
      %p420 = scmp.lt.s32.totalorder %s419, 63
      %s421 = scalar_select %p420, %s419, 63
      %s422 = smul.addr %s421, 4
      %s423 = scalar_lea.vmem %s3, %s422
      // Predicated region
      $region33: #{unet_block_outer_forward.15} parent=31 // pred_check
        %p424 = pneg %p100
      $region34: #{unet_block_outer_forward.15} parent=31 // pred_check_branch
        %426 = sbr.rel (%p424) target = $region36
      $region35: #{unet_block_outer_forward.15} parent=31 // pred_region
        %s427 = smul.u32 8, %s14
      $region36: #{unet_block_outer_forward.15} parent=31 // pred_fallthru
        _
    $region32: #{unet_block_outer_forward.15} parent=5 // pred_fallthru
      _
    %p428 = scmp.le.s32.totalorder 2, %s9
    // Predicated region
    $region37: #{unet_block_outer_forward.15} parent=5 // pred_check
      %p429 = pneg %p428
    $region38: #{unet_block_outer_forward.15} parent=5 // pred_check_branch
      %431 = sbr.rel (%p429) target = $region40
    $region39: #{unet_block_outer_forward.15} parent=5 // pred_region
      %s432 = ssub.s32 %s9, 2
      // Predicated region
      $region41: #{unet_block_outer_forward.15} parent=39 // pred_check
        %p433 = pneg %p106
      $region42: #{unet_block_outer_forward.15} parent=39 // pred_check_branch
        %435 = sbr.rel (%p433) target = $region44
      $region43: #{unet_block_outer_forward.15} parent=39 // pred_region
        %s436 = smul.u32 8, %s15
        %p437 = scmp.lt.s32.totalorder %s436, 63
        %s438 = scalar_select %p437, %s436, 63
        %s439 = smul.addr %s438, 4
        %s440 = scalar_lea.vmem %s3, %s439
      $region44: #{unet_block_outer_forward.15} parent=39 // pred_fallthru
        _
    $region40: #{unet_block_outer_forward.15} parent=5 // pred_fallthru
      _
  $region6: #{unet_block_outer_forward.15} parent=0 // loop_footer
    %s13 = sadd.s32 1, %s9
  $region7: #{unet_block_outer_forward.15} parent=0 // loop_footer_branch
    %8 = sbr.rel target = $region3
  $region8: #{unet_block_outer_forward.15} parent=0 // loop_exit
    _

</llo_original>
